<compile_context>
chip_gen: v5e
topology: v5e:2x2
jax: 0.10.0
libtpu: 0.0.40
codegen_flags: <defaults>
</compile_context>

<pallas_src>
import numpy as np
import jax
import jax.numpy as jnp
from jax.experimental import pallas as pl
from jax.experimental.pallas import tpu as pltpu

LEAKY_SLOPE = 0.01  # PyTorch nn.LeakyReLU default


def conv_output_size(input_size, pad, ks, stride):
    return (input_size + 2 * pad - (ks - 1) - 1) // stride + 1


def _round8(n):
    return ((n + 7) // 8) * 8


def _pad_block(m, width):
    h, w = m.shape
    out = np.zeros((_round8(h), width), np.float32)
    out[:h, :w] = m
    return out


# ---------------------------------------------------------------------------
# Host-side (numpy, done once) construction of per-layer Sel / G / bias.
# Activation layout everywhere: 2-D, rows = spatial h, cols = w*C + c.
# ---------------------------------------------------------------------------
def _conv_terms(w, b, h_in, w_in, stride, pad):
    """Conv2d(OC,IC,k,k): out = sum_kh Sel_kh @ X @ G_kh  (+ bias)."""
    oc, ic, k, _ = w.shape
    oh = (h_in + 2 * pad - k) // stride + 1
    ow = (w_in + 2 * pad - k) // stride + 1
    sels, gs = [], []
    for kh in range(k):
        sel = np.zeros((oh, h_in), np.float32)
        for o in range(oh):
            ih = stride * o - pad + kh
            if 0 <= ih < h_in:
                sel[o, ih] = 1.0
        g = np.zeros((w_in * ic, ow * oc), np.float32)
        for iw in range(w_in):
            for o in range(ow):
                kw = iw - stride * o + pad
                if 0 <= kw < k:
                    g[iw * ic:(iw + 1) * ic, o * oc:(o + 1) * oc] = w[:, :, kh, kw].T
        sels.append(sel)
        gs.append(g)
    bias = np.tile(b.astype(np.float32).reshape(1, 1, oc),
                   (oh, ow, 1)).reshape(oh, ow * oc)
    return sels, gs, bias, oh, ow


def _convT_terms(w, b, h_in, w_in, stride, pad):
    """ConvTranspose2d(IC,OC,k,k): out = sum_kh Sel_kh @ X @ G_kh  (+ bias)."""
    ic, oc, k, _ = w.shape
    oh = (h_in - 1) * stride - 2 * pad + k
    ow = (w_in - 1) * stride - 2 * pad + k
    sels, gs = [], []
    for kh in range(k):
        sel = np.zeros((oh, h_in), np.float32)
        for ih in range(h_in):
            o = stride * ih - pad + kh
            if 0 <= o < oh:
                sel[o, ih] = 1.0
        g = np.zeros((w_in * ic, ow * oc), np.float32)
        for iw in range(w_in):
            for o in range(ow):
                kw = o - stride * iw + pad
                if 0 <= kw < k:
                    g[iw * ic:(iw + 1) * ic, o * oc:(o + 1) * oc] = w[:, :, kh, kw]
        sels.append(sel)
        gs.append(g)
    bias = np.tile(b.astype(np.float32).reshape(1, 1, oc),
                   (oh, ow, 1)).reshape(oh, ow * oc)
    return sels, gs, bias, oh, ow


def _enc_linear_terms(wl, bl, a, c2, rows_out=8):
    """Flatten((c,h,w)) + Linear(F->E).  Embedding kept in row 0 of an (8,E) tile."""
    e = wl.shape[0]
    w3 = wl.reshape(e, c2, a, a)                     # [e, c, h, w] (PyTorch flatten order)
    sels, gs = [], []
    for h in range(a):
        sel = np.zeros((rows_out, a), np.float32)
        sel[0, h] = 1.0
        g = np.zeros((a * c2, e), np.float32)
        for w_ in range(a):
            g[w_ * c2:(w_ + 1) * c2, :] = w3[:, :, h, w_].T
        sels.append(sel)
        gs.append(g)
    bias = np.tile(bl.astype(np.float32).reshape(1, e), (rows_out, 1))
    return sels, gs, bias


def _dec_linear_terms(wd, bd, a, c2, rows_in=8):
    """Linear(E->c2*a*a) + reshape(c2,a,a), emitted directly in the conv layout."""
    e = wd.shape[1]
    w3 = wd.reshape(c2, a, a, e)                     # [c, h, w, e]  (PyTorch reshape order)
    b3 = bd.astype(np.float32).reshape(c2, a, a)
    sels, gs = [], []
    for h in range(a):
        sel = np.zeros((a, rows_in), np.float32)
        sel[h, 0] = 1.0
        g = np.zeros((e, a * c2), np.float32)
        for w_ in range(a):
            g[:, w_ * c2:(w_ + 1) * c2] = w3[:, h, w_, :].T
        sels.append(sel)
        gs.append(g)
    bias = np.zeros((a, a * c2), np.float32)
    for h in range(a):
        for w_ in range(a):
            bias[h, w_ * c2:(w_ + 1) * c2] = b3[:, h, w_]
    return sels, gs, bias


def build_fused_plan(params, meta, input_shape):
    """Precompute (outside jit, once) the packed Sel / G / bias buffers + static plan."""
    C, H, W = input_shape
    s, p = meta["stride"], meta["padding"]
    dec_c, a, _ = meta["dec_shape"]
    np_p = {n: np.asarray(v, np.float32) for n, v in params.items()}

    layers = []
    sels, gs, bias, oh, ow = _conv_terms(np_p["e_conv1_w"], np_p["e_conv1_b"], H, W, s, p)
    layers.append((sels, gs, bias))
    sels, gs, bias, oh, ow = _conv_terms(np_p["e_conv2_w"], np_p["e_conv2_b"], oh, ow, s, p)
    layers.append((sels, gs, bias))
    c2 = np_p["e_conv2_w"].shape[0]
    assert (oh, ow) == (a, a) and c2 == dec_c
    layers.append(_enc_linear_terms(np_p["e_lin_w"], np_p["e_lin_b"], a, c2))
    layers.append(_dec_linear_terms(np_p["d_lin_w"], np_p["d_lin_b"], a, dec_c))
    sels, gs, bias, oh, ow = _convT_terms(np_p["d_convt1_w"], np_p["d_convt1_b"], a, a, s, p)
    layers.append((sels, gs, bias))
    sels, gs, bias, oh, ow = _convT_terms(np_p["d_convt2_w"], np_p["d_convt2_b"], oh, ow, s, p)
    layers.append((sels, gs, bias))
    assert (oh, ow) == (H, W)

    sel_w = max(m.shape[1] for (ls, _, _) in layers for m in ls)
    g_w = max(m.shape[1] for (_, lg, _) in layers for m in lg)
    b_w = max(bm.shape[1] for (_, _, bm) in layers)

    sel_blocks, g_blocks, b_blocks, plan = [], [], [], []
    so = go = bo = 0
    for ls, lg, bm in layers:
        terms = []
        for sel_m, g_m in zip(ls, lg):
            sh, sw = sel_m.shape
            gh, gw = g_m.shape
            sel_blocks.append(_pad_block(sel_m, sel_w))
            g_blocks.append(_pad_block(g_m, g_w))
            terms.append((so, sh, sw, go, gh, gw))
            so += _round8(sh)
            go += _round8(gh)
        bh, bw = bm.shape
        b_blocks.append(_pad_block(bm, b_w))
        plan.append(dict(terms=terms, bias=(bo, bh, bw)))
        bo += _round8(bh)

    selpack = jnp.asarray(np.concatenate(sel_blocks, axis=0))
    gpack = jnp.asarray(np.concatenate(g_blocks, axis=0))
    biaspack = jnp.asarray(np.concatenate(b_blocks, axis=0))
    return plan, selpack, gpack, biaspack


# ---------------------------------------------------------------------------
# The fused Pallas kernel: whole forward pass, one grid step per batch sample.
# ---------------------------------------------------------------------------
def _make_kernel(plan):
    def kernel(x_ref, sel_ref, g_ref, bias_ref, o_ref):
        act = x_ref[...]                              # (H, W*C) for this sample
        for layer in plan:                            # python loop -> unrolled
            acc = None
            for (so, sh, sw, go, gh, gw) in layer["terms"]:
                sel = sel_ref[so:so + sh, 0:sw]       # static VMEM slices
                g = g_ref[go:go + gh, 0:gw]
                t = jnp.dot(sel, act, preferred_element_type=jnp.float32)
                u = jnp.dot(t, g, preferred_element_type=jnp.float32)
                acc = u if acc is None else acc + u
            bo, bh, bw = layer["bias"]
            y = acc + bias_ref[bo:bo + bh, 0:bw]
            act = jnp.maximum(y, LEAKY_SLOPE * y)     # LeakyReLU
        o_ref[...] = act
    return kernel


def make_cae_forward(params, meta, input_shape, batch):
    C, H, W = input_shape
    plan, selpack, gpack, biaspack = build_fused_plan(params, meta, input_shape)
    kernel = _make_kernel(plan)

    fused = pl.pallas_call(
        kernel,
        out_shape=jax.ShapeDtypeStruct((batch * H, W * C), jnp.float32),
        grid=(batch,),
        in_specs=[
            pl.BlockSpec((H, W * C), lambda b: (b, 0)),              # per-sample input
            pl.BlockSpec(tuple(selpack.shape), lambda b: (0, 0)),    # resident weights
            pl.BlockSpec(tuple(gpack.shape), lambda b: (0, 0)),
            pl.BlockSpec(tuple(biaspack.shape), lambda b: (0, 0)),
        ],
        out_specs=pl.BlockSpec((H, W * C), lambda b: (b, 0)),
        compiler_params=pltpu.CompilerParams(
            dimension_semantics=("parallel",)),
    )

    @jax.jit
    def _forward(x, sel_p, g_p, b_p):
        # NCHW -> (B*H, W*C) channels-last rows (single cheap transform).
        x2 = x.astype(jnp.float32).transpose(0, 2, 3, 1).reshape(batch * H, W * C)
        y2 = fused(x2, sel_p, g_p, b_p)
        return y2.reshape(batch, H, W, C).transpose(0, 3, 1, 2)

    def forward(x):
        return _forward(x, selpack, gpack, biaspack)

    return forward


# ---------------------------------------------------------------------------
# Parameter construction (deterministic, synthetic) -- PyTorch layouts.
# ---------------------------------------------------------------------------
def init_params(input_shape, embedding_shape, key):
    C, H, _ = input_shape
    k = 6 if H == 90 else 4
    stride, padding = 2, 1
    a = conv_output_size(conv_output_size(H, padding, k, stride), padding, k, stride)

    enc_filters = [32, 16]
    dec_filters = [16, 32]
    emb_in = a * a * enc_filters[-1]
    dec_lin_out = dec_filters[0] * a * a

    keys = jax.random.split(key, 12)
    scale = 0.05

    def rnd(kk, shape):
        return scale * jax.random.normal(kk, shape, dtype=jnp.float32)

    params = dict(
        e_conv1_w=rnd(keys[0], (enc_filters[0], C, k, k)),
        e_conv1_b=rnd(keys[1], (enc_filters[0],)),
        e_conv2_w=rnd(keys[2], (enc_filters[1], enc_filters[0], k, k)),
        e_conv2_b=rnd(keys[3], (enc_filters[1],)),
        e_lin_w=rnd(keys[4], (embedding_shape, emb_in)),
        e_lin_b=rnd(keys[5], (embedding_shape,)),
        d_lin_w=rnd(keys[6], (dec_lin_out, embedding_shape)),
        d_lin_b=rnd(keys[7], (dec_lin_out,)),
        d_convt1_w=rnd(keys[8], (dec_filters[0], dec_filters[1], k, k)),
        d_convt1_b=rnd(keys[9], (dec_filters[1],)),
        d_convt2_w=rnd(keys[10], (dec_filters[1], C, k, k)),
        d_convt2_b=rnd(keys[11], (C,)),
    )
    meta = dict(kernel_size=k, stride=stride, padding=padding,
                dec_shape=(dec_filters[0], a, a))
    return params, meta


# ---------------------------------------------------------------------------
# Plain-numpy reference (PyTorch semantics) for self-validation.
# ---------------------------------------------------------------------------
def _np_lrelu(x):
    return np.where(x >= 0, x, LEAKY_SLOPE * x)


def _np_conv2d(x, w, b, s, p):
    B, C, H, W = x.shape
    OC, IC, k, _ = w.shape
    OH = (H + 2 * p - k) // s + 1
    OW = (W + 2 * p - k) // s + 1
    xp = np.zeros((B, C, H + 2 * p, W + 2 * p), np.float32)
    xp[:, :, p:p + H, p:p + W] = x
    out = np.zeros((B, OC, OH, OW), np.float32)
    for kh in range(k):
        for kw in range(k):
            patch = xp[:, :, kh:kh + s * OH:s, kw:kw + s * OW:s]
            out += np.einsum('oi,bihw->bohw', w[:, :, kh, kw], patch)
    return out + b.reshape(1, OC, 1, 1)


def _np_convT2d(x, w, b, s, p):
    B, IC, H, W = x.shape
    _, OC, k, _ = w.shape
    FH = (H - 1) * s + k
    FW = (W - 1) * s + k
    full = np.zeros((B, OC, FH, FW), np.float32)
    for kh in range(k):
        for kw in range(k):
            contrib = np.einsum('io,bihw->bohw', w[:, :, kh, kw], x)
            full[:, :, kh:kh + s * H:s, kw:kw + s * W:s] += contrib
    return full[:, :, p:FH - p, p:FW - p] + b.reshape(1, OC, 1, 1)


def _np_reference(x, params, meta):
    pr = {n: np.asarray(v, np.float32) for n, v in params.items()}
    s, pd = meta["stride"], meta["padding"]
    B = x.shape[0]
    h = _np_lrelu(_np_conv2d(x, pr["e_conv1_w"], pr["e_conv1_b"], s, pd))
    h = _np_lrelu(_np_conv2d(h, pr["e_conv2_w"], pr["e_conv2_b"], s, pd))
    h = h.reshape(B, -1)
    emb = _np_lrelu(h @ pr["e_lin_w"].T + pr["e_lin_b"])
    d = _np_lrelu(emb @ pr["d_lin_w"].T + pr["d_lin_b"])
    d = d.reshape((B,) + meta["dec_shape"])
    d = _np_lrelu(_np_convT2d(d, pr["d_convt1_w"], pr["d_convt1_b"], s, pd))
    d = _np_lrelu(_np_convT2d(d, pr["d_convt2_w"], pr["d_convt2_b"], s, pd))
    return d


if __name__ == "__main__":
    input_shape = (4, 16, 16)     # (C, H, W)
    embedding_shape = 32
    batch = 2

    key = jax.random.PRNGKey(0)
    k_x, k_p = jax.random.split(key)
    x = jax.random.normal(k_x, (batch,) + input_shape, dtype=jnp.float32)

    params, meta = init_params(input_shape, embedding_shape, k_p)
    forward = make_cae_forward(params, meta, input_shape, batch)

    out = jax.block_until_ready(forward(x))

    assert out.shape == (batch,) + input_shape, out.shape
    assert out.dtype == jnp.float32
    assert bool(jnp.all(jnp.isfinite(out)))

    ref = _np_reference(np.asarray(x, np.float32), params, meta)
    err = float(np.max(np.abs(np.asarray(out) - ref)))
    tol = 0.05 * float(np.max(np.abs(ref))) + 1e-4
    assert err <= tol, (err, tol)

    print("KERNEL_OK")
</pallas_src>

<mosaic_0001>
module attributes {stable_mosaic.version = 11 : i64} {
  func.func @kernel(%arg0: i32, %arg1: memref<16x64xf32, #tpu.memory_space<vmem>>, %arg2: memref<224x16xf32, #tpu.memory_space<vmem>>, %arg3: memref<2944x256xf32, #tpu.memory_space<vmem>>, %arg4: memref<56x256xf32, #tpu.memory_space<vmem>>, %arg5: memref<16x64xf32, #tpu.memory_space<vmem>>) attributes {dimension_semantics = [#tpu.dimension_semantics<parallel>], iteration_bounds = array<i64: 2>, scalar_prefetch = 0 : i64, scratch_operands = 0 : i64, tpu.core_type = #tpu.core_type<tc>, window_params = [{transform_indices = @transform_0, window_bounds = array<i64: 16, 64>}, {pipeline_mode = #tpu.pipeline_mode<synchronous>, transform_indices = @transform_1, window_bounds = array<i64: 224, 16>}, {pipeline_mode = #tpu.pipeline_mode<synchronous>, transform_indices = @transform_2, window_bounds = array<i64: 2944, 256>}, {pipeline_mode = #tpu.pipeline_mode<synchronous>, transform_indices = @transform_3, window_bounds = array<i64: 56, 256>}, {transform_indices = @transform_4, window_bounds = array<i64: 16, 64>}]} {
    %c0 = arith.constant 0 : index
    %c0_0 = arith.constant 0 : index
    %0 = vector.load %arg1[%c0, %c0_0] : memref<16x64xf32, #tpu.memory_space<vmem>>, vector<16x64xf32>
    %c0_1 = arith.constant 0 : index
    %c0_2 = arith.constant 0 : index
    %1 = vector.load %arg2[%c0_1, %c0_2] : memref<224x16xf32, #tpu.memory_space<vmem>>, vector<8x16xf32>
    %c0_3 = arith.constant 0 : index
    %c0_4 = arith.constant 0 : index
    %2 = vector.load %arg3[%c0_3, %c0_4] : memref<2944x256xf32, #tpu.memory_space<vmem>>, vector<64x256xf32>
    %cst = arith.constant dense<0.000000e+00> : vector<8x64xf32>
    %3 = tpu.matmul %1, %0, %cst {dimension_numbers = #tpu.dot_dimension_numbers<[1], [0], [0], [1], [0, 0, 1, 1], [], []>} : vector<8x16xf32>, vector<16x64xf32>, vector<8x64xf32> -> vector<8x64xf32>
    %cst_5 = arith.constant dense<0.000000e+00> : vector<8x256xf32>
    %4 = tpu.matmul %3, %2, %cst_5 {dimension_numbers = #tpu.dot_dimension_numbers<[1], [0], [0], [1], [0, 0, 1, 1], [], []>} : vector<8x64xf32>, vector<64x256xf32>, vector<8x256xf32> -> vector<8x256xf32>
    %c8 = arith.constant 8 : index
    %c0_6 = arith.constant 0 : index
    %5 = vector.load %arg2[%c8, %c0_6] : memref<224x16xf32, #tpu.memory_space<vmem>>, vector<8x16xf32>
    %c64 = arith.constant 64 : index
    %c0_7 = arith.constant 0 : index
    %6 = vector.load %arg3[%c64, %c0_7] : memref<2944x256xf32, #tpu.memory_space<vmem>>, vector<64x256xf32>
    %cst_8 = arith.constant dense<0.000000e+00> : vector<8x64xf32>
    %7 = tpu.matmul %5, %0, %cst_8 {dimension_numbers = #tpu.dot_dimension_numbers<[1], [0], [0], [1], [0, 0, 1, 1], [], []>} : vector<8x16xf32>, vector<16x64xf32>, vector<8x64xf32> -> vector<8x64xf32>
    %cst_9 = arith.constant dense<0.000000e+00> : vector<8x256xf32>
    %8 = tpu.matmul %7, %6, %cst_9 {dimension_numbers = #tpu.dot_dimension_numbers<[1], [0], [0], [1], [0, 0, 1, 1], [], []>} : vector<8x64xf32>, vector<64x256xf32>, vector<8x256xf32> -> vector<8x256xf32>
    %9 = arith.addf %4, %8 : vector<8x256xf32>
    %c16 = arith.constant 16 : index
    %c0_10 = arith.constant 0 : index
    %10 = vector.load %arg2[%c16, %c0_10] : memref<224x16xf32, #tpu.memory_space<vmem>>, vector<8x16xf32>
    %c128 = arith.constant 128 : index
    %c0_11 = arith.constant 0 : index
    %11 = vector.load %arg3[%c128, %c0_11] : memref<2944x256xf32, #tpu.memory_space<vmem>>, vector<64x256xf32>
    %cst_12 = arith.constant dense<0.000000e+00> : vector<8x64xf32>
    %12 = tpu.matmul %10, %0, %cst_12 {dimension_numbers = #tpu.dot_dimension_numbers<[1], [0], [0], [1], [0, 0, 1, 1], [], []>} : vector<8x16xf32>, vector<16x64xf32>, vector<8x64xf32> -> vector<8x64xf32>
    %cst_13 = arith.constant dense<0.000000e+00> : vector<8x256xf32>
    %13 = tpu.matmul %12, %11, %cst_13 {dimension_numbers = #tpu.dot_dimension_numbers<[1], [0], [0], [1], [0, 0, 1, 1], [], []>} : vector<8x64xf32>, vector<64x256xf32>, vector<8x256xf32> -> vector<8x256xf32>
    %14 = arith.addf %9, %13 : vector<8x256xf32>
    %c24 = arith.constant 24 : index
    %c0_14 = arith.constant 0 : index
    %15 = vector.load %arg2[%c24, %c0_14] : memref<224x16xf32, #tpu.memory_space<vmem>>, vector<8x16xf32>
    %c192 = arith.constant 192 : index
    %c0_15 = arith.constant 0 : index
    %16 = vector.load %arg3[%c192, %c0_15] : memref<2944x256xf32, #tpu.memory_space<vmem>>, vector<64x256xf32>
    %cst_16 = arith.constant dense<0.000000e+00> : vector<8x64xf32>
    %17 = tpu.matmul %15, %0, %cst_16 {dimension_numbers = #tpu.dot_dimension_numbers<[1], [0], [0], [1], [0, 0, 1, 1], [], []>} : vector<8x16xf32>, vector<16x64xf32>, vector<8x64xf32> -> vector<8x64xf32>
    %cst_17 = arith.constant dense<0.000000e+00> : vector<8x256xf32>
    %18 = tpu.matmul %17, %16, %cst_17 {dimension_numbers = #tpu.dot_dimension_numbers<[1], [0], [0], [1], [0, 0, 1, 1], [], []>} : vector<8x64xf32>, vector<64x256xf32>, vector<8x256xf32> -> vector<8x256xf32>
    %19 = arith.addf %14, %18 : vector<8x256xf32>
    %c0_18 = arith.constant 0 : index
    %c0_19 = arith.constant 0 : index
    %20 = vector.load %arg4[%c0_18, %c0_19] : memref<56x256xf32, #tpu.memory_space<vmem>>, vector<8x256xf32>
    %21 = arith.addf %19, %20 : vector<8x256xf32>
    %cst_20 = arith.constant 0.00999999977 : f32
    %22 = vector.broadcast %cst_20 : f32 to vector<8x256xf32>
    %23 = arith.mulf %22, %21 : vector<8x256xf32>
    %24 = arith.maximumf %21, %23 : vector<8x256xf32>
    %c32 = arith.constant 32 : index
    %c0_21 = arith.constant 0 : index
    %25 = vector.load %arg2[%c32, %c0_21] : memref<224x16xf32, #tpu.memory_space<vmem>>, vector<4x8xf32>
    %c256 = arith.constant 256 : index
    %c0_22 = arith.constant 0 : index
    %26 = vector.load %arg3[%c256, %c0_22] : memref<2944x256xf32, #tpu.memory_space<vmem>>, vector<256x64xf32>
    %cst_23 = arith.constant dense<0.000000e+00> : vector<4x256xf32>
    %27 = tpu.matmul %25, %24, %cst_23 {dimension_numbers = #tpu.dot_dimension_numbers<[1], [0], [0], [1], [0, 0, 1, 1], [], []>} : vector<4x8xf32>, vector<8x256xf32>, vector<4x256xf32> -> vector<4x256xf32>
    %cst_24 = arith.constant dense<0.000000e+00> : vector<4x64xf32>
    %28 = tpu.matmul %27, %26, %cst_24 {dimension_numbers = #tpu.dot_dimension_numbers<[1], [0], [0], [1], [0, 0, 1, 1], [], []>} : vector<4x256xf32>, vector<256x64xf32>, vector<4x64xf32> -> vector<4x64xf32>
    %c40 = arith.constant 40 : index
    %c0_25 = arith.constant 0 : index
    %29 = vector.load %arg2[%c40, %c0_25] : memref<224x16xf32, #tpu.memory_space<vmem>>, vector<4x8xf32>
    %c512 = arith.constant 512 : index
    %c0_26 = arith.constant 0 : index
    %30 = vector.load %arg3[%c512, %c0_26] : memref<2944x256xf32, #tpu.memory_space<vmem>>, vector<256x64xf32>
    %cst_27 = arith.constant dense<0.000000e+00> : vector<4x256xf32>
    %31 = tpu.matmul %29, %24, %cst_27 {dimension_numbers = #tpu.dot_dimension_numbers<[1], [0], [0], [1], [0, 0, 1, 1], [], []>} : vector<4x8xf32>, vector<8x256xf32>, vector<4x256xf32> -> vector<4x256xf32>
    %cst_28 = arith.constant dense<0.000000e+00> : vector<4x64xf32>
    %32 = tpu.matmul %31, %30, %cst_28 {dimension_numbers = #tpu.dot_dimension_numbers<[1], [0], [0], [1], [0, 0, 1, 1], [], []>} : vector<4x256xf32>, vector<256x64xf32>, vector<4x64xf32> -> vector<4x64xf32>
    %33 = arith.addf %28, %32 : vector<4x64xf32>
    %c48 = arith.constant 48 : index
    %c0_29 = arith.constant 0 : index
    %34 = vector.load %arg2[%c48, %c0_29] : memref<224x16xf32, #tpu.memory_space<vmem>>, vector<4x8xf32>
    %c768 = arith.constant 768 : index
    %c0_30 = arith.constant 0 : index
    %35 = vector.load %arg3[%c768, %c0_30] : memref<2944x256xf32, #tpu.memory_space<vmem>>, vector<256x64xf32>
    %cst_31 = arith.constant dense<0.000000e+00> : vector<4x256xf32>
    %36 = tpu.matmul %34, %24, %cst_31 {dimension_numbers = #tpu.dot_dimension_numbers<[1], [0], [0], [1], [0, 0, 1, 1], [], []>} : vector<4x8xf32>, vector<8x256xf32>, vector<4x256xf32> -> vector<4x256xf32>
    %cst_32 = arith.constant dense<0.000000e+00> : vector<4x64xf32>
    %37 = tpu.matmul %36, %35, %cst_32 {dimension_numbers = #tpu.dot_dimension_numbers<[1], [0], [0], [1], [0, 0, 1, 1], [], []>} : vector<4x256xf32>, vector<256x64xf32>, vector<4x64xf32> -> vector<4x64xf32>
    %38 = arith.addf %33, %37 : vector<4x64xf32>
    %c56 = arith.constant 56 : index
    %c0_33 = arith.constant 0 : index
    %39 = vector.load %arg2[%c56, %c0_33] : memref<224x16xf32, #tpu.memory_space<vmem>>, vector<4x8xf32>
    %c1024 = arith.constant 1024 : index
    %c0_34 = arith.constant 0 : index
    %40 = vector.load %arg3[%c1024, %c0_34] : memref<2944x256xf32, #tpu.memory_space<vmem>>, vector<256x64xf32>
    %cst_35 = arith.constant dense<0.000000e+00> : vector<4x256xf32>
    %41 = tpu.matmul %39, %24, %cst_35 {dimension_numbers = #tpu.dot_dimension_numbers<[1], [0], [0], [1], [0, 0, 1, 1], [], []>} : vector<4x8xf32>, vector<8x256xf32>, vector<4x256xf32> -> vector<4x256xf32>
    %cst_36 = arith.constant dense<0.000000e+00> : vector<4x64xf32>
    %42 = tpu.matmul %41, %40, %cst_36 {dimension_numbers = #tpu.dot_dimension_numbers<[1], [0], [0], [1], [0, 0, 1, 1], [], []>} : vector<4x256xf32>, vector<256x64xf32>, vector<4x64xf32> -> vector<4x64xf32>
    %43 = arith.addf %38, %42 : vector<4x64xf32>
    %c8_37 = arith.constant 8 : index
    %c0_38 = arith.constant 0 : index
    %44 = vector.load %arg4[%c8_37, %c0_38] : memref<56x256xf32, #tpu.memory_space<vmem>>, vector<4x64xf32>
    %45 = arith.addf %43, %44 : vector<4x64xf32>
    %cst_39 = arith.constant 0.00999999977 : f32
    %46 = vector.broadcast %cst_39 : f32 to vector<4x64xf32>
    %47 = arith.mulf %46, %45 : vector<4x64xf32>
    %48 = arith.maximumf %45, %47 : vector<4x64xf32>
    %c64_40 = arith.constant 64 : index
    %c0_41 = arith.constant 0 : index
    %49 = vector.load %arg2[%c64_40, %c0_41] : memref<224x16xf32, #tpu.memory_space<vmem>>, vector<8x4xf32>
    %c1280 = arith.constant 1280 : index
    %c0_42 = arith.constant 0 : index
    %50 = vector.load %arg3[%c1280, %c0_42] : memref<2944x256xf32, #tpu.memory_space<vmem>>, vector<64x32xf32>
    %cst_43 = arith.constant dense<0.000000e+00> : vector<8x64xf32>
    %51 = tpu.matmul %49, %48, %cst_43 {dimension_numbers = #tpu.dot_dimension_numbers<[1], [0], [0], [1], [0, 0, 1, 1], [], []>} : vector<8x4xf32>, vector<4x64xf32>, vector<8x64xf32> -> vector<8x64xf32>
    %cst_44 = arith.constant dense<0.000000e+00> : vector<8x32xf32>
    %52 = tpu.matmul %51, %50, %cst_44 {dimension_numbers = #tpu.dot_dimension_numbers<[1], [0], [0], [1], [0, 0, 1, 1], [], []>} : vector<8x64xf32>, vector<64x32xf32>, vector<8x32xf32> -> vector<8x32xf32>
    %c72 = arith.constant 72 : index
    %c0_45 = arith.constant 0 : index
    %53 = vector.load %arg2[%c72, %c0_45] : memref<224x16xf32, #tpu.memory_space<vmem>>, vector<8x4xf32>
    %c1344 = arith.constant 1344 : index
    %c0_46 = arith.constant 0 : index
    %54 = vector.load %arg3[%c1344, %c0_46] : memref<2944x256xf32, #tpu.memory_space<vmem>>, vector<64x32xf32>
    %cst_47 = arith.constant dense<0.000000e+00> : vector<8x64xf32>
    %55 = tpu.matmul %53, %48, %cst_47 {dimension_numbers = #tpu.dot_dimension_numbers<[1], [0], [0], [1], [0, 0, 1, 1], [], []>} : vector<8x4xf32>, vector<4x64xf32>, vector<8x64xf32> -> vector<8x64xf32>
    %cst_48 = arith.constant dense<0.000000e+00> : vector<8x32xf32>
    %56 = tpu.matmul %55, %54, %cst_48 {dimension_numbers = #tpu.dot_dimension_numbers<[1], [0], [0], [1], [0, 0, 1, 1], [], []>} : vector<8x64xf32>, vector<64x32xf32>, vector<8x32xf32> -> vector<8x32xf32>
    %57 = arith.addf %52, %56 : vector<8x32xf32>
    %c80 = arith.constant 80 : index
    %c0_49 = arith.constant 0 : index
    %58 = vector.load %arg2[%c80, %c0_49] : memref<224x16xf32, #tpu.memory_space<vmem>>, vector<8x4xf32>
    %c1408 = arith.constant 1408 : index
    %c0_50 = arith.constant 0 : index
    %59 = vector.load %arg3[%c1408, %c0_50] : memref<2944x256xf32, #tpu.memory_space<vmem>>, vector<64x32xf32>
    %cst_51 = arith.constant dense<0.000000e+00> : vector<8x64xf32>
    %60 = tpu.matmul %58, %48, %cst_51 {dimension_numbers = #tpu.dot_dimension_numbers<[1], [0], [0], [1], [0, 0, 1, 1], [], []>} : vector<8x4xf32>, vector<4x64xf32>, vector<8x64xf32> -> vector<8x64xf32>
    %cst_52 = arith.constant dense<0.000000e+00> : vector<8x32xf32>
    %61 = tpu.matmul %60, %59, %cst_52 {dimension_numbers = #tpu.dot_dimension_numbers<[1], [0], [0], [1], [0, 0, 1, 1], [], []>} : vector<8x64xf32>, vector<64x32xf32>, vector<8x32xf32> -> vector<8x32xf32>
    %62 = arith.addf %57, %61 : vector<8x32xf32>
    %c88 = arith.constant 88 : index
    %c0_53 = arith.constant 0 : index
    %63 = vector.load %arg2[%c88, %c0_53] : memref<224x16xf32, #tpu.memory_space<vmem>>, vector<8x4xf32>
    %c1472 = arith.constant 1472 : index
    %c0_54 = arith.constant 0 : index
    %64 = vector.load %arg3[%c1472, %c0_54] : memref<2944x256xf32, #tpu.memory_space<vmem>>, vector<64x32xf32>
    %cst_55 = arith.constant dense<0.000000e+00> : vector<8x64xf32>
    %65 = tpu.matmul %63, %48, %cst_55 {dimension_numbers = #tpu.dot_dimension_numbers<[1], [0], [0], [1], [0, 0, 1, 1], [], []>} : vector<8x4xf32>, vector<4x64xf32>, vector<8x64xf32> -> vector<8x64xf32>
    %cst_56 = arith.constant dense<0.000000e+00> : vector<8x32xf32>
    %66 = tpu.matmul %65, %64, %cst_56 {dimension_numbers = #tpu.dot_dimension_numbers<[1], [0], [0], [1], [0, 0, 1, 1], [], []>} : vector<8x64xf32>, vector<64x32xf32>, vector<8x32xf32> -> vector<8x32xf32>
    %67 = arith.addf %62, %66 : vector<8x32xf32>
    %c16_57 = arith.constant 16 : index
    %c0_58 = arith.constant 0 : index
    %68 = vector.load %arg4[%c16_57, %c0_58] : memref<56x256xf32, #tpu.memory_space<vmem>>, vector<8x32xf32>
    %69 = arith.addf %67, %68 : vector<8x32xf32>
    %cst_59 = arith.constant 0.00999999977 : f32
    %70 = vector.broadcast %cst_59 : f32 to vector<8x32xf32>
    %71 = arith.mulf %70, %69 : vector<8x32xf32>
    %72 = arith.maximumf %69, %71 : vector<8x32xf32>
    %c96 = arith.constant 96 : index
    %c0_60 = arith.constant 0 : index
    %73 = vector.load %arg2[%c96, %c0_60] : memref<224x16xf32, #tpu.memory_space<vmem>>, vector<4x8xf32>
    %c1536 = arith.constant 1536 : index
    %c0_61 = arith.constant 0 : index
    %74 = vector.load %arg3[%c1536, %c0_61] : memref<2944x256xf32, #tpu.memory_space<vmem>>, vector<32x64xf32>
    %cst_62 = arith.constant dense<0.000000e+00> : vector<4x32xf32>
    %75 = tpu.matmul %73, %72, %cst_62 {dimension_numbers = #tpu.dot_dimension_numbers<[1], [0], [0], [1], [0, 0, 1, 1], [], []>} : vector<4x8xf32>, vector<8x32xf32>, vector<4x32xf32> -> vector<4x32xf32>
    %cst_63 = arith.constant dense<0.000000e+00> : vector<4x64xf32>
    %76 = tpu.matmul %75, %74, %cst_63 {dimension_numbers = #tpu.dot_dimension_numbers<[1], [0], [0], [1], [0, 0, 1, 1], [], []>} : vector<4x32xf32>, vector<32x64xf32>, vector<4x64xf32> -> vector<4x64xf32>
    %c104 = arith.constant 104 : index
    %c0_64 = arith.constant 0 : index
    %77 = vector.load %arg2[%c104, %c0_64] : memref<224x16xf32, #tpu.memory_space<vmem>>, vector<4x8xf32>
    %c1568 = arith.constant 1568 : index
    %c0_65 = arith.constant 0 : index
    %78 = vector.load %arg3[%c1568, %c0_65] : memref<2944x256xf32, #tpu.memory_space<vmem>>, vector<32x64xf32>
    %cst_66 = arith.constant dense<0.000000e+00> : vector<4x32xf32>
    %79 = tpu.matmul %77, %72, %cst_66 {dimension_numbers = #tpu.dot_dimension_numbers<[1], [0], [0], [1], [0, 0, 1, 1], [], []>} : vector<4x8xf32>, vector<8x32xf32>, vector<4x32xf32> -> vector<4x32xf32>
    %cst_67 = arith.constant dense<0.000000e+00> : vector<4x64xf32>
    %80 = tpu.matmul %79, %78, %cst_67 {dimension_numbers = #tpu.dot_dimension_numbers<[1], [0], [0], [1], [0, 0, 1, 1], [], []>} : vector<4x32xf32>, vector<32x64xf32>, vector<4x64xf32> -> vector<4x64xf32>
    %81 = arith.addf %76, %80 : vector<4x64xf32>
    %c112 = arith.constant 112 : index
    %c0_68 = arith.constant 0 : index
    %82 = vector.load %arg2[%c112, %c0_68] : memref<224x16xf32, #tpu.memory_space<vmem>>, vector<4x8xf32>
    %c1600 = arith.constant 1600 : index
    %c0_69 = arith.constant 0 : index
    %83 = vector.load %arg3[%c1600, %c0_69] : memref<2944x256xf32, #tpu.memory_space<vmem>>, vector<32x64xf32>
    %cst_70 = arith.constant dense<0.000000e+00> : vector<4x32xf32>
    %84 = tpu.matmul %82, %72, %cst_70 {dimension_numbers = #tpu.dot_dimension_numbers<[1], [0], [0], [1], [0, 0, 1, 1], [], []>} : vector<4x8xf32>, vector<8x32xf32>, vector<4x32xf32> -> vector<4x32xf32>
    %cst_71 = arith.constant dense<0.000000e+00> : vector<4x64xf32>
    %85 = tpu.matmul %84, %83, %cst_71 {dimension_numbers = #tpu.dot_dimension_numbers<[1], [0], [0], [1], [0, 0, 1, 1], [], []>} : vector<4x32xf32>, vector<32x64xf32>, vector<4x64xf32> -> vector<4x64xf32>
    %86 = arith.addf %81, %85 : vector<4x64xf32>
    %c120 = arith.constant 120 : index
    %c0_72 = arith.constant 0 : index
    %87 = vector.load %arg2[%c120, %c0_72] : memref<224x16xf32, #tpu.memory_space<vmem>>, vector<4x8xf32>
    %c1632 = arith.constant 1632 : index
    %c0_73 = arith.constant 0 : index
    %88 = vector.load %arg3[%c1632, %c0_73] : memref<2944x256xf32, #tpu.memory_space<vmem>>, vector<32x64xf32>
    %cst_74 = arith.constant dense<0.000000e+00> : vector<4x32xf32>
    %89 = tpu.matmul %87, %72, %cst_74 {dimension_numbers = #tpu.dot_dimension_numbers<[1], [0], [0], [1], [0, 0, 1, 1], [], []>} : vector<4x8xf32>, vector<8x32xf32>, vector<4x32xf32> -> vector<4x32xf32>
    %cst_75 = arith.constant dense<0.000000e+00> : vector<4x64xf32>
    %90 = tpu.matmul %89, %88, %cst_75 {dimension_numbers = #tpu.dot_dimension_numbers<[1], [0], [0], [1], [0, 0, 1, 1], [], []>} : vector<4x32xf32>, vector<32x64xf32>, vector<4x64xf32> -> vector<4x64xf32>
    %91 = arith.addf %86, %90 : vector<4x64xf32>
    %c24_76 = arith.constant 24 : index
    %c0_77 = arith.constant 0 : index
    %92 = vector.load %arg4[%c24_76, %c0_77] : memref<56x256xf32, #tpu.memory_space<vmem>>, vector<4x64xf32>
    %93 = arith.addf %91, %92 : vector<4x64xf32>
    %cst_78 = arith.constant 0.00999999977 : f32
    %94 = vector.broadcast %cst_78 : f32 to vector<4x64xf32>
    %95 = arith.mulf %94, %93 : vector<4x64xf32>
    %96 = arith.maximumf %93, %95 : vector<4x64xf32>
    %c128_79 = arith.constant 128 : index
    %c0_80 = arith.constant 0 : index
    %97 = vector.load %arg2[%c128_79, %c0_80] : memref<224x16xf32, #tpu.memory_space<vmem>>, vector<8x4xf32>
    %c1664 = arith.constant 1664 : index
    %c0_81 = arith.constant 0 : index
    %98 = vector.load %arg3[%c1664, %c0_81] : memref<2944x256xf32, #tpu.memory_space<vmem>>, vector<64x256xf32>
    %cst_82 = arith.constant dense<0.000000e+00> : vector<8x64xf32>
    %99 = tpu.matmul %97, %96, %cst_82 {dimension_numbers = #tpu.dot_dimension_numbers<[1], [0], [0], [1], [0, 0, 1, 1], [], []>} : vector<8x4xf32>, vector<4x64xf32>, vector<8x64xf32> -> vector<8x64xf32>
    %cst_83 = arith.constant dense<0.000000e+00> : vector<8x256xf32>
    %100 = tpu.matmul %99, %98, %cst_83 {dimension_numbers = #tpu.dot_dimension_numbers<[1], [0], [0], [1], [0, 0, 1, 1], [], []>} : vector<8x64xf32>, vector<64x256xf32>, vector<8x256xf32> -> vector<8x256xf32>
    %c136 = arith.constant 136 : index
    %c0_84 = arith.constant 0 : index
    %101 = vector.load %arg2[%c136, %c0_84] : memref<224x16xf32, #tpu.memory_space<vmem>>, vector<8x4xf32>
    %c1728 = arith.constant 1728 : index
    %c0_85 = arith.constant 0 : index
    %102 = vector.load %arg3[%c1728, %c0_85] : memref<2944x256xf32, #tpu.memory_space<vmem>>, vector<64x256xf32>
    %cst_86 = arith.constant dense<0.000000e+00> : vector<8x64xf32>
    %103 = tpu.matmul %101, %96, %cst_86 {dimension_numbers = #tpu.dot_dimension_numbers<[1], [0], [0], [1], [0, 0, 1, 1], [], []>} : vector<8x4xf32>, vector<4x64xf32>, vector<8x64xf32> -> vector<8x64xf32>
    %cst_87 = arith.constant dense<0.000000e+00> : vector<8x256xf32>
    %104 = tpu.matmul %103, %102, %cst_87 {dimension_numbers = #tpu.dot_dimension_numbers<[1], [0], [0], [1], [0, 0, 1, 1], [], []>} : vector<8x64xf32>, vector<64x256xf32>, vector<8x256xf32> -> vector<8x256xf32>
    %105 = arith.addf %100, %104 : vector<8x256xf32>
    %c144 = arith.constant 144 : index
    %c0_88 = arith.constant 0 : index
    %106 = vector.load %arg2[%c144, %c0_88] : memref<224x16xf32, #tpu.memory_space<vmem>>, vector<8x4xf32>
    %c1792 = arith.constant 1792 : index
    %c0_89 = arith.constant 0 : index
    %107 = vector.load %arg3[%c1792, %c0_89] : memref<2944x256xf32, #tpu.memory_space<vmem>>, vector<64x256xf32>
    %cst_90 = arith.constant dense<0.000000e+00> : vector<8x64xf32>
    %108 = tpu.matmul %106, %96, %cst_90 {dimension_numbers = #tpu.dot_dimension_numbers<[1], [0], [0], [1], [0, 0, 1, 1], [], []>} : vector<8x4xf32>, vector<4x64xf32>, vector<8x64xf32> -> vector<8x64xf32>
    %cst_91 = arith.constant dense<0.000000e+00> : vector<8x256xf32>
    %109 = tpu.matmul %108, %107, %cst_91 {dimension_numbers = #tpu.dot_dimension_numbers<[1], [0], [0], [1], [0, 0, 1, 1], [], []>} : vector<8x64xf32>, vector<64x256xf32>, vector<8x256xf32> -> vector<8x256xf32>
    %110 = arith.addf %105, %109 : vector<8x256xf32>
    %c152 = arith.constant 152 : index
    %c0_92 = arith.constant 0 : index
    %111 = vector.load %arg2[%c152, %c0_92] : memref<224x16xf32, #tpu.memory_space<vmem>>, vector<8x4xf32>
    %c1856 = arith.constant 1856 : index
    %c0_93 = arith.constant 0 : index
    %112 = vector.load %arg3[%c1856, %c0_93] : memref<2944x256xf32, #tpu.memory_space<vmem>>, vector<64x256xf32>
    %cst_94 = arith.constant dense<0.000000e+00> : vector<8x64xf32>
    %113 = tpu.matmul %111, %96, %cst_94 {dimension_numbers = #tpu.dot_dimension_numbers<[1], [0], [0], [1], [0, 0, 1, 1], [], []>} : vector<8x4xf32>, vector<4x64xf32>, vector<8x64xf32> -> vector<8x64xf32>
    %cst_95 = arith.constant dense<0.000000e+00> : vector<8x256xf32>
    %114 = tpu.matmul %113, %112, %cst_95 {dimension_numbers = #tpu.dot_dimension_numbers<[1], [0], [0], [1], [0, 0, 1, 1], [], []>} : vector<8x64xf32>, vector<64x256xf32>, vector<8x256xf32> -> vector<8x256xf32>
    %115 = arith.addf %110, %114 : vector<8x256xf32>
    %c32_96 = arith.constant 32 : index
    %c0_97 = arith.constant 0 : index
    %116 = vector.load %arg4[%c32_96, %c0_97] : memref<56x256xf32, #tpu.memory_space<vmem>>, vector<8x256xf32>
    %117 = arith.addf %115, %116 : vector<8x256xf32>
    %cst_98 = arith.constant 0.00999999977 : f32
    %118 = vector.broadcast %cst_98 : f32 to vector<8x256xf32>
    %119 = arith.mulf %118, %117 : vector<8x256xf32>
    %120 = arith.maximumf %117, %119 : vector<8x256xf32>
    %c160 = arith.constant 160 : index
    %c0_99 = arith.constant 0 : index
    %121 = vector.load %arg2[%c160, %c0_99] : memref<224x16xf32, #tpu.memory_space<vmem>>, vector<16x8xf32>
    %c1920 = arith.constant 1920 : index
    %c0_100 = arith.constant 0 : index
    %122 = vector.load %arg3[%c1920, %c0_100] : memref<2944x256xf32, #tpu.memory_space<vmem>>, vector<256x64xf32>
    %cst_101 = arith.constant dense<0.000000e+00> : vector<16x256xf32>
    %123 = tpu.matmul %121, %120, %cst_101 {dimension_numbers = #tpu.dot_dimension_numbers<[1], [0], [0], [1], [0, 0, 1, 1], [], []>} : vector<16x8xf32>, vector<8x256xf32>, vector<16x256xf32> -> vector<16x256xf32>
    %cst_102 = arith.constant dense<0.000000e+00> : vector<16x64xf32>
    %124 = tpu.matmul %123, %122, %cst_102 {dimension_numbers = #tpu.dot_dimension_numbers<[1], [0], [0], [1], [0, 0, 1, 1], [], []>} : vector<16x256xf32>, vector<256x64xf32>, vector<16x64xf32> -> vector<16x64xf32>
    %c176 = arith.constant 176 : index
    %c0_103 = arith.constant 0 : index
    %125 = vector.load %arg2[%c176, %c0_103] : memref<224x16xf32, #tpu.memory_space<vmem>>, vector<16x8xf32>
    %c2176 = arith.constant 2176 : index
    %c0_104 = arith.constant 0 : index
    %126 = vector.load %arg3[%c2176, %c0_104] : memref<2944x256xf32, #tpu.memory_space<vmem>>, vector<256x64xf32>
    %cst_105 = arith.constant dense<0.000000e+00> : vector<16x256xf32>
    %127 = tpu.matmul %125, %120, %cst_105 {dimension_numbers = #tpu.dot_dimension_numbers<[1], [0], [0], [1], [0, 0, 1, 1], [], []>} : vector<16x8xf32>, vector<8x256xf32>, vector<16x256xf32> -> vector<16x256xf32>
    %cst_106 = arith.constant dense<0.000000e+00> : vector<16x64xf32>
    %128 = tpu.matmul %127, %126, %cst_106 {dimension_numbers = #tpu.dot_dimension_numbers<[1], [0], [0], [1], [0, 0, 1, 1], [], []>} : vector<16x256xf32>, vector<256x64xf32>, vector<16x64xf32> -> vector<16x64xf32>
    %129 = arith.addf %124, %128 : vector<16x64xf32>
    %c192_107 = arith.constant 192 : index
    %c0_108 = arith.constant 0 : index
    %130 = vector.load %arg2[%c192_107, %c0_108] : memref<224x16xf32, #tpu.memory_space<vmem>>, vector<16x8xf32>
    %c2432 = arith.constant 2432 : index
    %c0_109 = arith.constant 0 : index
    %131 = vector.load %arg3[%c2432, %c0_109] : memref<2944x256xf32, #tpu.memory_space<vmem>>, vector<256x64xf32>
    %cst_110 = arith.constant dense<0.000000e+00> : vector<16x256xf32>
    %132 = tpu.matmul %130, %120, %cst_110 {dimension_numbers = #tpu.dot_dimension_numbers<[1], [0], [0], [1], [0, 0, 1, 1], [], []>} : vector<16x8xf32>, vector<8x256xf32>, vector<16x256xf32> -> vector<16x256xf32>
    %cst_111 = arith.constant dense<0.000000e+00> : vector<16x64xf32>
    %133 = tpu.matmul %132, %131, %cst_111 {dimension_numbers = #tpu.dot_dimension_numbers<[1], [0], [0], [1], [0, 0, 1, 1], [], []>} : vector<16x256xf32>, vector<256x64xf32>, vector<16x64xf32> -> vector<16x64xf32>
    %134 = arith.addf %129, %133 : vector<16x64xf32>
    %c208 = arith.constant 208 : index
    %c0_112 = arith.constant 0 : index
    %135 = vector.load %arg2[%c208, %c0_112] : memref<224x16xf32, #tpu.memory_space<vmem>>, vector<16x8xf32>
    %c2688 = arith.constant 2688 : index
    %c0_113 = arith.constant 0 : index
    %136 = vector.load %arg3[%c2688, %c0_113] : memref<2944x256xf32, #tpu.memory_space<vmem>>, vector<256x64xf32>
    %cst_114 = arith.constant dense<0.000000e+00> : vector<16x256xf32>
    %137 = tpu.matmul %135, %120, %cst_114 {dimension_numbers = #tpu.dot_dimension_numbers<[1], [0], [0], [1], [0, 0, 1, 1], [], []>} : vector<16x8xf32>, vector<8x256xf32>, vector<16x256xf32> -> vector<16x256xf32>
    %cst_115 = arith.constant dense<0.000000e+00> : vector<16x64xf32>
    %138 = tpu.matmul %137, %136, %cst_115 {dimension_numbers = #tpu.dot_dimension_numbers<[1], [0], [0], [1], [0, 0, 1, 1], [], []>} : vector<16x256xf32>, vector<256x64xf32>, vector<16x64xf32> -> vector<16x64xf32>
    %139 = arith.addf %134, %138 : vector<16x64xf32>
    %c40_116 = arith.constant 40 : index
    %c0_117 = arith.constant 0 : index
    %140 = vector.load %arg4[%c40_116, %c0_117] : memref<56x256xf32, #tpu.memory_space<vmem>>, vector<16x64xf32>
    %141 = arith.addf %139, %140 : vector<16x64xf32>
    %cst_118 = arith.constant 0.00999999977 : f32
    %142 = vector.broadcast %cst_118 : f32 to vector<16x64xf32>
    %143 = arith.mulf %142, %141 : vector<16x64xf32>
    %144 = arith.maximumf %141, %143 : vector<16x64xf32>
    %c0_119 = arith.constant 0 : index
    %c0_120 = arith.constant 0 : index
    %145 = vector.load %arg5[%c0_119, %c0_120] : memref<16x64xf32, #tpu.memory_space<vmem>>, vector<16x64xf32>
    tpu.vector_store %arg5[%c0_119, %c0_120], %144 {strides = array<i32>} : memref<16x64xf32, #tpu.memory_space<vmem>>, vector<16x64xf32>,
    return
  }
  func.func @transform_0(%arg0: i32) -> (i32, i32) {
    %c0_i32 = arith.constant 0 : i32
    %c0_i32_0 = arith.constant 0 : i32
    return %arg0, %c0_i32 : i32, i32
  }
  func.func @transform_1(%arg0: i32) -> (i32, i32) {
    %c0_i32 = arith.constant 0 : i32
    %c0_i32_0 = arith.constant 0 : i32
    %c0_i32_1 = arith.constant 0 : i32
    return %c0_i32, %c0_i32_0 : i32, i32
  }
  func.func @transform_2(%arg0: i32) -> (i32, i32) {
    %c0_i32 = arith.constant 0 : i32
    %c0_i32_0 = arith.constant 0 : i32
    %c0_i32_1 = arith.constant 0 : i32
    return %c0_i32, %c0_i32_0 : i32, i32
  }
  func.func @transform_3(%arg0: i32) -> (i32, i32) {
    %c0_i32 = arith.constant 0 : i32
    %c0_i32_0 = arith.constant 0 : i32
    %c0_i32_1 = arith.constant 0 : i32
    return %c0_i32, %c0_i32_0 : i32, i32
  }
  func.func @transform_4(%arg0: i32) -> (i32, i32) {
    %c0_i32 = arith.constant 0 : i32
    %c0_i32_0 = arith.constant 0 : i32
    return %arg0, %c0_i32 : i32, i32
  }
}

</mosaic_0001>

<llo_original>
// kernel: _forward.1
$region0: #{_forward.1}
  #allocation0 [shape = 'u32[]', space=smem, size = 0x4, offset = 0x4, fixed_abs, tag = 'smem constant byte address 0x4 - core index']
  #allocation1 [shape = 'u32[72,128]{1,0:T(1,128)}', space=vmem, size = 0x9000, scoped, tag = 'internal scratch']
  %s0 = inlined_call_operand.vmem [shape: f32[32,64], index: 0, kind: input, shape index: {}]
  %s1 = inlined_call_operand.vmem [shape: f32[224,16], index: 1, kind: input, shape index: {}]
  %s2 = inlined_call_operand.hbm [shape: f32[2944,256], index: 2, kind: input, shape index: {}]
  %s3 = inlined_call_operand.hbm [shape: f32[56,256], index: 3, kind: input, shape index: {}]
  %s4 = inlined_call_operand.vmem [shape: f32[32,64], index: 4, kind: output, shape index: {}]
  %s5 = sld [smem:[#allocation0]]
  $region57: #{_forward.1} parent=0
    _
  %s7 = ssub.s32 1, %s5
  %s8 = scalar_select 0, %s7, %s5
  $region1: #{_forward.1} parent=0
    #allocation2 [shape = 'u8[3014656]{0}', space=vmem, size = 0x2e0000, scoped, tag = 'input window, operand 2, single buffered']
    #allocation3 [shape = 's32[2]{0}', space=sflag, size = 0x8, scoped, tag = 'scoped memory for _forward.1']
    #allocation4 [shape = 'u8[57344]{0}', space=vmem, size = 0xe000, scoped, tag = 'input window, operand 3, single buffered']
    #allocation5 [shape = 's32[1]{0}', space=sflag, size = 0x4, scoped, tag = 'scoped memory for _forward.1']
    %9 = vsyncpa [#allocation3], 0
    %10 = vsyncpa [#allocation5], 0
    loop: start=0, step=1, limit=4
    $region2: #{_forward.1} parent=1 // loop_pre_header
      _
    $region3: #{_forward.1} parent=1 // loop_header
      %s12 = sphi 0, %s16
      %p13 = scmp.ge.s32.totalorder %s12, 4
      %s22 = sphi 0, %s24
      %s25 = sphi 0, %s22
      %s26 = sphi 0, %s25
      %s42 = sphi 0, %s26
      %s46 = sphi 0, %s46
      %s48 = sphi 0, %s46
      %s49 = sphi 0, %s48
      %s63 = sphi 0, %s49
      %s67 = sphi 0, %s67
      %s69 = sphi 0, %s67
      %s70 = sphi 0, %s69
      %s84 = sphi 0, %s70
      %s88 = sphi 0, %s88
      %s90 = sphi 0, %s88
      %s91 = sphi 0, %s90
      %s105 = sphi 0, %s91
      %s111 = sphi 0, %s113
      %s114 = sphi 0, %s111
      %s115 = sphi 0, %s114
      %s131 = sphi 0, %s115
    $region4: #{_forward.1} parent=1 // loop_header_branch
      %15 = sbr.rel (%p13) target = $region8
    $region5: #{_forward.1} parent=1 // loop_body
      %s17 = ssub.s32 %s12, 1
      %s18 = ssub.s32 %s12, 2
      %s19 = sadd.s32 %s12, 1
      %s20 = ssub.s32 %s12, %s19
      %p21 = scmp.eq.s32.totalorder %s20, 0
      %s23 = sadd.s32 %s22, 1
      %s24 = scalar_select %p21, %s22, %s23
      %p27 = pneg %p21
      %p28 = scmp.eq.s32.totalorder %s12, 1
      %p29 = por %p27, %p28
      %p30 = scmp.ne.s32.totalorder %s22, %s25
      %p31 = scmp.eq.s32.totalorder %s12, 0
      %p32 = por %p30, %p31
      %p33 = scmp.ne.s32.totalorder %s22, %s25
      %p34 = scmp.eq.s32.totalorder %s17, 1
      %p35 = por %p33, %p34
      %p36 = scmp.ne.s32.totalorder %s25, %s26
      %p37 = scmp.eq.s32.totalorder %s17, 0
      %p38 = por %p36, %p37
      %p39 = scmp.ne.s32.totalorder %s25, %s26
      %p40 = scmp.eq.s32.totalorder %s18, 1
      %p41 = por %p39, %p40
      %p43 = scmp.ne.s32.totalorder %s26, %s42
      %p44 = scmp.eq.s32.totalorder %s18, 0
      %p45 = por %p43, %p44
      %s47 = sadd.s32 %s46, 1
      %p50 = scmp.eq.s32.totalorder %s12, 1
      %p51 = scmp.ne.s32.totalorder %s46, %s48
      %p52 = scmp.eq.s32.totalorder %s12, 0
      %p53 = por %p51, %p52
      %p54 = scmp.ne.s32.totalorder %s46, %s48
      %p55 = scmp.eq.s32.totalorder %s17, 1
      %p56 = por %p54, %p55
      %p57 = scmp.ne.s32.totalorder %s48, %s49
      %p58 = scmp.eq.s32.totalorder %s17, 0
      %p59 = por %p57, %p58
      %p60 = scmp.ne.s32.totalorder %s48, %s49
      %p61 = scmp.eq.s32.totalorder %s18, 1
      %p62 = por %p60, %p61
      %p64 = scmp.ne.s32.totalorder %s49, %s63
      %p65 = scmp.eq.s32.totalorder %s18, 0
      %p66 = por %p64, %p65
      %s68 = sadd.s32 %s67, 1
      %p71 = scmp.eq.s32.totalorder %s12, 1
      %p72 = scmp.ne.s32.totalorder %s67, %s69
      %p73 = scmp.eq.s32.totalorder %s12, 0
      %p74 = por %p72, %p73
      %p75 = scmp.ne.s32.totalorder %s67, %s69
      %p76 = scmp.eq.s32.totalorder %s17, 1
      %p77 = por %p75, %p76
      %p78 = scmp.ne.s32.totalorder %s69, %s70
      %p79 = scmp.eq.s32.totalorder %s17, 0
      %p80 = por %p78, %p79
      %p81 = scmp.ne.s32.totalorder %s69, %s70
      %p82 = scmp.eq.s32.totalorder %s18, 1
      %p83 = por %p81, %p82
      %p85 = scmp.ne.s32.totalorder %s70, %s84
      %p86 = scmp.eq.s32.totalorder %s18, 0
      %p87 = por %p85, %p86
      %s89 = sadd.s32 %s88, 1
      %p92 = scmp.eq.s32.totalorder %s12, 1
      %p93 = scmp.ne.s32.totalorder %s88, %s90
      %p94 = scmp.eq.s32.totalorder %s12, 0
      %p95 = por %p93, %p94
      %p96 = scmp.ne.s32.totalorder %s88, %s90
      %p97 = scmp.eq.s32.totalorder %s17, 1
      %p98 = por %p96, %p97
      %p99 = scmp.ne.s32.totalorder %s90, %s91
      %p100 = scmp.eq.s32.totalorder %s17, 0
      %p101 = por %p99, %p100
      %p102 = scmp.ne.s32.totalorder %s90, %s91
      %p103 = scmp.eq.s32.totalorder %s18, 1
      %p104 = por %p102, %p103
      %p106 = scmp.ne.s32.totalorder %s91, %s105
      %p107 = scmp.eq.s32.totalorder %s18, 0
      %p108 = por %p106, %p107
      %s109 = ssub.s32 %s12, %s19
      %p110 = scmp.eq.s32.totalorder %s109, 0
      %s112 = sadd.s32 %s111, 1
      %s113 = scalar_select %p110, %s111, %s112
      %p116 = pneg %p110
      %p117 = scmp.eq.s32.totalorder %s12, 1
      %p118 = por %p116, %p117
      %p119 = scmp.ne.s32.totalorder %s111, %s114
      %p120 = scmp.eq.s32.totalorder %s12, 0
      %p121 = por %p119, %p120
      %p122 = scmp.ne.s32.totalorder %s111, %s114
      %p123 = scmp.eq.s32.totalorder %s17, 1
      %p124 = por %p122, %p123
      %p125 = scmp.ne.s32.totalorder %s114, %s115
      %p126 = scmp.eq.s32.totalorder %s17, 0
      %p127 = por %p125, %p126
      %p128 = scmp.ne.s32.totalorder %s114, %s115
      %p129 = scmp.eq.s32.totalorder %s18, 1
      %p130 = por %p128, %p129
      %p132 = scmp.ne.s32.totalorder %s115, %s131
      %p133 = scmp.eq.s32.totalorder %s18, 0
      %p134 = por %p132, %p133
      %p135 = scmp.le.s32.totalorder 1, %s12
      %p136 = scmp.lt.s32.totalorder %s12, 3
      %p137 = pnand %p135, %p136
      %p138 = pneg %p137
      // Predicated region
      $region9: #{_forward.1} parent=5 // pred_check
        _
      $region10: #{_forward.1} parent=5 // pred_check_branch
        %140 = sbr.rel (%p137) target = $region12
      $region11: #{_forward.1} parent=5 // pred_region
        %s141 = ssub.s32 %s12, 1
        // Predicated region
        $region13: #{_forward.1} parent=11 // pred_check
          %p142 = pneg %p59
        $region14: #{_forward.1} parent=11 // pred_check_branch
          %144 = sbr.rel (%p142) target = $region16
        $region15: #{_forward.1} parent=11 // pred_region
          _
        $region16: #{_forward.1} parent=11 // pred_fallthru
          _
        // Predicated region
        $region17: #{_forward.1} parent=11 // pred_check
          %p145 = pneg %p80
        $region18: #{_forward.1} parent=11 // pred_check_branch
          %147 = sbr.rel (%p145) target = $region20
        $region19: #{_forward.1} parent=11 // pred_region
          %149 = vsyncadd [#allocation3], 0
          %s150 = sshll.u32 %s2, 4
          %s151 = int_to_ptr.hbm [resolvable:$true] %s150
          %s152 = sshll.u32 [#allocation2], 4
          %s153 = int_to_ptr.vmem [resolvable:$true] %s152
          %158 = dma.hbm_to_vmem [thread:$0]  %s151, 94208, %s153, [#allocation3], 256, 256, 16
        $region20: #{_forward.1} parent=11 // pred_fallthru
          _
        // Predicated region
        $region21: #{_forward.1} parent=11 // pred_check
          %p159 = pneg %p101
        $region22: #{_forward.1} parent=11 // pred_check_branch
          %161 = sbr.rel (%p159) target = $region24
        $region23: #{_forward.1} parent=11 // pred_region
          %163 = vsyncadd [#allocation5], 0
          %s164 = sshll.u32 %s3, 4
          %s165 = int_to_ptr.hbm [resolvable:$true] %s164
          %s166 = sshll.u32 [#allocation4], 4
          %s167 = int_to_ptr.vmem [resolvable:$true] %s166
          %172 = dma.hbm_to_vmem [thread:$0]  %s165, 1792, %s167, [#allocation5], 256, 256, 16
        $region24: #{_forward.1} parent=11 // pred_fallthru
          _
      $region12: #{_forward.1} parent=5 // pred_fallthru
        _
      %p173 = scmp.lt.s32.totalorder %s12, 2
      // Predicated region
      $region25: #{_forward.1} parent=5 // pred_check
        %p174 = pneg %p173
      $region26: #{_forward.1} parent=5 // pred_check_branch
        %176 = sbr.rel (%p174) target = $region28
      $region27: #{_forward.1} parent=5 // pred_region
        // Predicated region
        $region29: #{_forward.1} parent=27 // pred_check
          %p177 = pneg %p32
        $region30: #{_forward.1} parent=27 // pred_check_branch
          %179 = sbr.rel (%p177) target = $region32
        $region31: #{_forward.1} parent=27 // pred_region
          %s180 = smul.u32 2, %s12
          %p181 = scmp.lt.s32.totalorder %s180, 3
          %s182 = scalar_select %p181, %s180, 3
          %s183 = smul.addr %s182, 8
          %s184 = scalar_lea.vmem %s0, %s183
          %s185 = smul.u32 2, %s12
        $region32: #{_forward.1} parent=27 // pred_fallthru
          _
      $region28: #{_forward.1} parent=5 // pred_fallthru
        _
      %p186 = scmp.le.s32.totalorder 1, %s12
      %p187 = scmp.lt.s32.totalorder %s12, 3
      %p188 = pnand %p186, %p187
      %p189 = pneg %p188
      // Predicated region
      $region33: #{_forward.1} parent=5 // pred_check
        _
      $region34: #{_forward.1} parent=5 // pred_check_branch
        %191 = sbr.rel (%p188) target = $region36
      $region35: #{_forward.1} parent=5 // pred_region
        %s192 = ssub.s32 %s12, 1
        // Predicated region
        $region37: #{_forward.1} parent=35 // pred_check
          %p193 = pneg %p80
        $region38: #{_forward.1} parent=35 // pred_check_branch
          %195 = sbr.rel (%p193) target = $region40
        $region39: #{_forward.1} parent=35 // pred_region
          %197 = dma.done [#allocation3], 94208
        $region40: #{_forward.1} parent=35 // pred_fallthru
          _
        // Predicated region
        $region41: #{_forward.1} parent=35 // pred_check
          %p198 = pneg %p101
        $region42: #{_forward.1} parent=35 // pred_check_branch
          %200 = sbr.rel (%p198) target = $region44
        $region43: #{_forward.1} parent=35 // pred_region
          %202 = dma.done [#allocation5], 1792
        $region44: #{_forward.1} parent=35 // pred_fallthru
          _
        %s203 = smul.u32 2, %s17
        %p204 = scmp.lt.s32.totalorder %s203, 3
        %s205 = scalar_select %p204, %s203, 3
        %s206 = smul.addr %s205, 8
        %s207 = scalar_lea.vmem %s0, %s206
        %p208 = pneg %p38
        %p209 = pneg %p35
        %p210 = pneg %p59
        %p211 = pneg %p56
        %p212 = pneg %p80
        %p213 = pneg %p77
        %p214 = pneg %p101
        %p215 = pneg %p98
        %p216 = pneg %p127
        %p217 = pneg %p124
        %s218 = smul.u32 2, %s17
        %p219 = scmp.lt.s32.totalorder %s218, 3
        %s220 = scalar_select %p219, %s218, 3
        %s221 = smul.addr %s220, 8
        %s222 = scalar_lea.vmem %s4, %s221
        %s223 = smul.u32 2, %s17
        %p224 = scmp.lt.s32.totalorder %s223, 3
        %s225 = scalar_select %p224, %s223, 3
        %s226 = smul.addr %s225, 8
        %s227 = scalar_lea.vmem %s0, %s226
        %s228 = smul.u32 2, %s17
        %s229 = smul.u32 2, %s17
        %p230 = scmp.lt.s32.totalorder %s229, 3
        %s231 = scalar_select %p230, %s229, 3
        %s232 = smul.addr %s231, 8
        %s233 = scalar_lea.vmem %s4, %s232
        %s234 = smul.u32 2, %s17
        %v235 = vld [vmem:[%s227] sm:$0xff]
        %v236 = vld [vmem:[%s227 + $0x8] sm:$0xff]
        %v237 = vld [vmem:[%s1] sm:$0xff]
        %v238 = vld [vmem:[#allocation2] sm:$0xff]
        %v239 = vld [vmem:[#allocation2 + $0x8] sm:$0xff]
        %v240 = vld [vmem:[#allocation2 + $0x10] sm:$0xff]
        %v241 = vld [vmem:[#allocation2 + $0x18] sm:$0xff]
        %v242 = vld [vmem:[#allocation2 + $0x20] sm:$0xff]
        %v243 = vld [vmem:[#allocation2 + $0x28] sm:$0xff]
        %v244 = vld [vmem:[#allocation2 + $0x30] sm:$0xff]
        %v245 = vld [vmem:[#allocation2 + $0x38] sm:$0xff]
        %v246 = vld [vmem:[#allocation2 + $0x40] sm:$0xff]
        %v247 = vld [vmem:[#allocation2 + $0x48] sm:$0xff]
        %v248 = vld [vmem:[#allocation2 + $0x50] sm:$0xff]
        %v249 = vld [vmem:[#allocation2 + $0x58] sm:$0xff]
        %v250 = vld [vmem:[#allocation2 + $0x60] sm:$0xff]
        %v251 = vld [vmem:[#allocation2 + $0x68] sm:$0xff]
        %v252 = vld [vmem:[#allocation2 + $0x70] sm:$0xff]
        %v253 = vld [vmem:[#allocation2 + $0x78] sm:$0xff]
        %vm254 = vcmask 130048
        %v256 = vsel %vm254, %v237, 0
        %258 = vmatpush.msra.mxu0 0.0
        %259 = vmatpush.msra.mxu0 0.0
        %260 = vmatpush.msra.mxu0 0.0
        %261 = vmatpush.msra.mxu0 0.0
        %262 = vmatpush.msra.mxu0 0.0
        %263 = vmatpush.msra.mxu0 0.0
        %264 = vmatpush.msra.mxu0 0.0
        %265 = vmatpush.msra.mxu0 0.0
        %266 = vmatpush.msra.mxu0 0.0
        %267 = vmatpush.msra.mxu0 0.0
        %268 = vmatpush.msra.mxu0 0.0
        %269 = vmatpush.msra.mxu0 0.0
        %270 = vmatpush.msra.mxu0 0.0
        %271 = vmatpush.msra.mxu0 0.0
        %272 = vmatpush.msra.mxu0 %v236
        %273 = vmatpush.msra.mxu0 %v235
        %274 = vmatmul.f32.gmra.mxu0 %v256
        %v275 = vpop.f32.mrf.mxu0
        %v276 = vadd.f32 0.0, %v275
        %277 = vdwg.mxu0
        %v278 = vld [vmem:[%s1 + $0x8] sm:$0xff]
        %v279 = vld [vmem:[#allocation2 + $0x80] sm:$0xff]
        %v280 = vld [vmem:[#allocation2 + $0x88] sm:$0xff]
        %v281 = vld [vmem:[#allocation2 + $0x90] sm:$0xff]
        %v282 = vld [vmem:[#allocation2 + $0x98] sm:$0xff]
        %v283 = vld [vmem:[#allocation2 + $0xa0] sm:$0xff]
        %v284 = vld [vmem:[#allocation2 + $0xa8] sm:$0xff]
        %v285 = vld [vmem:[#allocation2 + $0xb0] sm:$0xff]
        %v286 = vld [vmem:[#allocation2 + $0xb8] sm:$0xff]
        %v287 = vld [vmem:[#allocation2 + $0xc0] sm:$0xff]
        %v288 = vld [vmem:[#allocation2 + $0xc8] sm:$0xff]
        %v289 = vld [vmem:[#allocation2 + $0xd0] sm:$0xff]
        %v290 = vld [vmem:[#allocation2 + $0xd8] sm:$0xff]
        %v291 = vld [vmem:[#allocation2 + $0xe0] sm:$0xff]
        %v292 = vld [vmem:[#allocation2 + $0xe8] sm:$0xff]
        %v293 = vld [vmem:[#allocation2 + $0xf0] sm:$0xff]
        %v294 = vld [vmem:[#allocation2 + $0xf8] sm:$0xff]
        %v296 = vsel %vm254, %v278, 0
        %298 = vmatpush.msra.mxu0 0.0
        %299 = vmatpush.msra.mxu0 0.0
        %300 = vmatpush.msra.mxu0 0.0
        %301 = vmatpush.msra.mxu0 0.0
        %302 = vmatpush.msra.mxu0 0.0
        %303 = vmatpush.msra.mxu0 0.0
        %304 = vmatpush.msra.mxu0 0.0
        %305 = vmatpush.msra.mxu0 0.0
        %306 = vmatpush.msra.mxu0 0.0
        %307 = vmatpush.msra.mxu0 0.0
        %308 = vmatpush.msra.mxu0 0.0
        %309 = vmatpush.msra.mxu0 0.0
        %310 = vmatpush.msra.mxu0 0.0
        %311 = vmatpush.msra.mxu0 0.0
        %312 = vmatpush.msra.mxu0 %v236
        %313 = vmatpush.msra.mxu0 %v235
        %314 = vmatmul.f32.gmra.mxu0 %v296
        %v315 = vpop.f32.mrf.mxu0
        %v316 = vadd.f32 0.0, %v315
        %317 = vdwg.mxu0
        %vm318 = vcmask 523264
        %v320 = vsel %vm318, %v316, 0
        %322 = vmatpush.msra.mxu0 0.0
        %323 = vmatpush.msra.mxu0 0.0
        %324 = vmatpush.msra.mxu0 0.0
        %325 = vmatpush.msra.mxu0 0.0
        %326 = vmatpush.msra.mxu0 0.0
        %327 = vmatpush.msra.mxu0 0.0
        %328 = vmatpush.msra.mxu0 0.0
        %329 = vmatpush.msra.mxu0 0.0
        %330 = vmatpush.msra.mxu0 %v293
        %331 = vmatpush.msra.mxu0 %v291
        %332 = vmatpush.msra.mxu0 %v289
        %333 = vmatpush.msra.mxu0 %v287
        %334 = vmatpush.msra.mxu0 %v285
        %335 = vmatpush.msra.mxu0 %v283
        %336 = vmatpush.msra.mxu0 %v281
        %337 = vmatpush.msra.mxu0 %v279
        %338 = vmatmul.f32.gmra.mxu0 %v320
        %v339 = vpop.f32.mrf.mxu0
        %v340 = vadd.f32 0.0, %v339
        %341 = vdwg.mxu0
        %342 = vmatpush.msra.mxu0 0.0
        %343 = vmatpush.msra.mxu0 0.0
        %344 = vmatpush.msra.mxu0 0.0
        %345 = vmatpush.msra.mxu0 0.0
        %346 = vmatpush.msra.mxu0 0.0
        %347 = vmatpush.msra.mxu0 0.0
        %348 = vmatpush.msra.mxu0 0.0
        %349 = vmatpush.msra.mxu0 0.0
        %350 = vmatpush.msra.mxu0 %v294
        %351 = vmatpush.msra.mxu0 %v292
        %352 = vmatpush.msra.mxu0 %v290
        %353 = vmatpush.msra.mxu0 %v288
        %354 = vmatpush.msra.mxu0 %v286
        %355 = vmatpush.msra.mxu0 %v284
        %356 = vmatpush.msra.mxu0 %v282
        %357 = vmatpush.msra.mxu0 %v280
        %358 = vmatmul.f32.gmra.mxu0 %v320
        %v359 = vpop.f32.mrf.mxu0
        %v360 = vadd.f32 0.0, %v359
        %361 = vdwg.mxu0
        %v363 = vsel %vm318, %v276, 0
        %365 = vmatpush.msra.mxu0 0.0
        %366 = vmatpush.msra.mxu0 0.0
        %367 = vmatpush.msra.mxu0 0.0
        %368 = vmatpush.msra.mxu0 0.0
        %369 = vmatpush.msra.mxu0 0.0
        %370 = vmatpush.msra.mxu0 0.0
        %371 = vmatpush.msra.mxu0 0.0
        %372 = vmatpush.msra.mxu0 0.0
        %373 = vmatpush.msra.mxu0 %v252
        %374 = vmatpush.msra.mxu0 %v250
        %375 = vmatpush.msra.mxu0 %v248
        %376 = vmatpush.msra.mxu0 %v246
        %377 = vmatpush.msra.mxu0 %v244
        %378 = vmatpush.msra.mxu0 %v242
        %379 = vmatpush.msra.mxu0 %v240
        %380 = vmatpush.msra.mxu0 %v238
        %381 = vmatmul.f32.gmra.mxu0 %v363
        %v382 = vpop.f32.mrf.mxu0
        %v383 = vadd.f32 %v340, %v382
        %384 = vdwg.mxu0
        %385 = vmatpush.msra.mxu0 0.0
        %386 = vmatpush.msra.mxu0 0.0
        %387 = vmatpush.msra.mxu0 0.0
        %388 = vmatpush.msra.mxu0 0.0
        %389 = vmatpush.msra.mxu0 0.0
        %390 = vmatpush.msra.mxu0 0.0
        %391 = vmatpush.msra.mxu0 0.0
        %392 = vmatpush.msra.mxu0 0.0
        %393 = vmatpush.msra.mxu0 %v253
        %394 = vmatpush.msra.mxu0 %v251
        %395 = vmatpush.msra.mxu0 %v249
        %396 = vmatpush.msra.mxu0 %v247
        %397 = vmatpush.msra.mxu0 %v245
        %398 = vmatpush.msra.mxu0 %v243
        %399 = vmatpush.msra.mxu0 %v241
        %400 = vmatpush.msra.mxu0 %v239
        %401 = vmatmul.f32.gmra.mxu0 %v363
        %v402 = vpop.f32.mrf.mxu0
        %v403 = vadd.f32 %v360, %v402
        %404 = vdwg.mxu0
        %v405 = vld [vmem:[%s1 + $0x10] sm:$0xff]
        %v406 = vld [vmem:[#allocation2 + $0x100] sm:$0xff]
        %v407 = vld [vmem:[#allocation2 + $0x108] sm:$0xff]
        %v408 = vld [vmem:[#allocation2 + $0x110] sm:$0xff]
        %v409 = vld [vmem:[#allocation2 + $0x118] sm:$0xff]
        %v410 = vld [vmem:[#allocation2 + $0x120] sm:$0xff]
        %v411 = vld [vmem:[#allocation2 + $0x128] sm:$0xff]
        %v412 = vld [vmem:[#allocation2 + $0x130] sm:$0xff]
        %v413 = vld [vmem:[#allocation2 + $0x138] sm:$0xff]
        %v414 = vld [vmem:[#allocation2 + $0x140] sm:$0xff]
        %v415 = vld [vmem:[#allocation2 + $0x148] sm:$0xff]
        %v416 = vld [vmem:[#allocation2 + $0x150] sm:$0xff]
        %v417 = vld [vmem:[#allocation2 + $0x158] sm:$0xff]
        %v418 = vld [vmem:[#allocation2 + $0x160] sm:$0xff]
        %v419 = vld [vmem:[#allocation2 + $0x168] sm:$0xff]
        %v420 = vld [vmem:[#allocation2 + $0x170] sm:$0xff]
        %v421 = vld [vmem:[#allocation2 + $0x178] sm:$0xff]
        %v423 = vsel %vm254, %v405, 0
        %425 = vmatpush.msra.mxu0 0.0
        %426 = vmatpush.msra.mxu0 0.0
        %427 = vmatpush.msra.mxu0 0.0
        %428 = vmatpush.msra.mxu0 0.0
        %429 = vmatpush.msra.mxu0 0.0
        %430 = vmatpush.msra.mxu0 0.0
        %431 = vmatpush.msra.mxu0 0.0
        %432 = vmatpush.msra.mxu0 0.0
        %433 = vmatpush.msra.mxu0 0.0
        %434 = vmatpush.msra.mxu0 0.0
        %435 = vmatpush.msra.mxu0 0.0
        %436 = vmatpush.msra.mxu0 0.0
        %437 = vmatpush.msra.mxu0 0.0
        %438 = vmatpush.msra.mxu0 0.0
        %439 = vmatpush.msra.mxu0 %v236
        %440 = vmatpush.msra.mxu0 %v235
        %441 = vmatmul.f32.gmra.mxu0 %v423
        %v442 = vpop.f32.mrf.mxu0
        %v443 = vadd.f32 0.0, %v442
        %444 = vdwg.mxu0
        %v446 = vsel %vm318, %v443, 0
        %448 = vmatpush.msra.mxu0 0.0
        %449 = vmatpush.msra.mxu0 0.0
        %450 = vmatpush.msra.mxu0 0.0
        %451 = vmatpush.msra.mxu0 0.0
        %452 = vmatpush.msra.mxu0 0.0
        %453 = vmatpush.msra.mxu0 0.0
        %454 = vmatpush.msra.mxu0 0.0
        %455 = vmatpush.msra.mxu0 0.0
        %456 = vmatpush.msra.mxu0 %v420
        %457 = vmatpush.msra.mxu0 %v418
        %458 = vmatpush.msra.mxu0 %v416
        %459 = vmatpush.msra.mxu0 %v414
        %460 = vmatpush.msra.mxu0 %v412
        %461 = vmatpush.msra.mxu0 %v410
        %462 = vmatpush.msra.mxu0 %v408
        %463 = vmatpush.msra.mxu0 %v406
        %464 = vmatmul.f32.gmra.mxu0 %v446
        %v465 = vpop.f32.mrf.mxu0
        %v466 = vadd.f32 0.0, %v465
        %467 = vdwg.mxu0
        %468 = vmatpush.msra.mxu0 0.0
        %469 = vmatpush.msra.mxu0 0.0
        %470 = vmatpush.msra.mxu0 0.0
        %471 = vmatpush.msra.mxu0 0.0
        %472 = vmatpush.msra.mxu0 0.0
        %473 = vmatpush.msra.mxu0 0.0
        %474 = vmatpush.msra.mxu0 0.0
        %475 = vmatpush.msra.mxu0 0.0
        %476 = vmatpush.msra.mxu0 %v421
        %477 = vmatpush.msra.mxu0 %v419
        %478 = vmatpush.msra.mxu0 %v417
        %479 = vmatpush.msra.mxu0 %v415
        %480 = vmatpush.msra.mxu0 %v413
        %481 = vmatpush.msra.mxu0 %v411
        %482 = vmatpush.msra.mxu0 %v409
        %483 = vmatpush.msra.mxu0 %v407
        %484 = vmatmul.f32.gmra.mxu0 %v446
        %v485 = vpop.f32.mrf.mxu0
        %v486 = vadd.f32 0.0, %v485
        %487 = vdwg.mxu0
        %v488 = vadd.f32 %v383, %v466
        %v489 = vadd.f32 %v403, %v486
        %v490 = vld [vmem:[%s1 + $0x18] sm:$0xff]
        %v491 = vld [vmem:[#allocation2 + $0x180] sm:$0xff]
        %v492 = vld [vmem:[#allocation2 + $0x188] sm:$0xff]
        %v493 = vld [vmem:[#allocation2 + $0x190] sm:$0xff]
        %v494 = vld [vmem:[#allocation2 + $0x198] sm:$0xff]
        %v495 = vld [vmem:[#allocation2 + $0x1a0] sm:$0xff]
        %v496 = vld [vmem:[#allocation2 + $0x1a8] sm:$0xff]
        %v497 = vld [vmem:[#allocation2 + $0x1b0] sm:$0xff]
        %v498 = vld [vmem:[#allocation2 + $0x1b8] sm:$0xff]
        %v499 = vld [vmem:[#allocation2 + $0x1c0] sm:$0xff]
        %v500 = vld [vmem:[#allocation2 + $0x1c8] sm:$0xff]
        %v501 = vld [vmem:[#allocation2 + $0x1d0] sm:$0xff]
        %v502 = vld [vmem:[#allocation2 + $0x1d8] sm:$0xff]
        %v503 = vld [vmem:[#allocation2 + $0x1e0] sm:$0xff]
        %v504 = vld [vmem:[#allocation2 + $0x1e8] sm:$0xff]
        %v505 = vld [vmem:[#allocation2 + $0x1f0] sm:$0xff]
        %v506 = vld [vmem:[#allocation2 + $0x1f8] sm:$0xff]
        %v508 = vsel %vm254, %v490, 0
        %510 = vmatpush.msra.mxu0 0.0
        %511 = vmatpush.msra.mxu0 0.0
        %512 = vmatpush.msra.mxu0 0.0
        %513 = vmatpush.msra.mxu0 0.0
        %514 = vmatpush.msra.mxu0 0.0
        %515 = vmatpush.msra.mxu0 0.0
        %516 = vmatpush.msra.mxu0 0.0
        %517 = vmatpush.msra.mxu0 0.0
        %518 = vmatpush.msra.mxu0 0.0
        %519 = vmatpush.msra.mxu0 0.0
        %520 = vmatpush.msra.mxu0 0.0
        %521 = vmatpush.msra.mxu0 0.0
        %522 = vmatpush.msra.mxu0 0.0
        %523 = vmatpush.msra.mxu0 0.0
        %524 = vmatpush.msra.mxu0 %v236
        %525 = vmatpush.msra.mxu0 %v235
        %526 = vmatmul.f32.gmra.mxu0 %v508
        %v527 = vpop.f32.mrf.mxu0
        %v528 = vadd.f32 0.0, %v527
        %529 = vdwg.mxu0
        %v531 = vsel %vm318, %v528, 0
        %533 = vmatpush.msra.mxu0 0.0
        %534 = vmatpush.msra.mxu0 0.0
        %535 = vmatpush.msra.mxu0 0.0
        %536 = vmatpush.msra.mxu0 0.0
        %537 = vmatpush.msra.mxu0 0.0
        %538 = vmatpush.msra.mxu0 0.0
        %539 = vmatpush.msra.mxu0 0.0
        %540 = vmatpush.msra.mxu0 0.0
        %541 = vmatpush.msra.mxu0 %v505
        %542 = vmatpush.msra.mxu0 %v503
        %543 = vmatpush.msra.mxu0 %v501
        %544 = vmatpush.msra.mxu0 %v499
        %545 = vmatpush.msra.mxu0 %v497
        %546 = vmatpush.msra.mxu0 %v495
        %547 = vmatpush.msra.mxu0 %v493
        %548 = vmatpush.msra.mxu0 %v491
        %549 = vmatmul.f32.gmra.mxu0 %v531
        %v550 = vpop.f32.mrf.mxu0
        %v551 = vadd.f32 0.0, %v550
        %552 = vdwg.mxu0
        %553 = vmatpush.msra.mxu0 0.0
        %554 = vmatpush.msra.mxu0 0.0
        %555 = vmatpush.msra.mxu0 0.0
        %556 = vmatpush.msra.mxu0 0.0
        %557 = vmatpush.msra.mxu0 0.0
        %558 = vmatpush.msra.mxu0 0.0
        %559 = vmatpush.msra.mxu0 0.0
        %560 = vmatpush.msra.mxu0 0.0
        %561 = vmatpush.msra.mxu0 %v506
        %562 = vmatpush.msra.mxu0 %v504
        %563 = vmatpush.msra.mxu0 %v502
        %564 = vmatpush.msra.mxu0 %v500
        %565 = vmatpush.msra.mxu0 %v498
        %566 = vmatpush.msra.mxu0 %v496
        %567 = vmatpush.msra.mxu0 %v494
        %568 = vmatpush.msra.mxu0 %v492
        %569 = vmatmul.f32.gmra.mxu0 %v531
        %v570 = vpop.f32.mrf.mxu0
        %v571 = vadd.f32 0.0, %v570
        %572 = vdwg.mxu0
        %v573 = vadd.f32 %v488, %v551
        %v574 = vadd.f32 %v489, %v571
        %v575 = vld [vmem:[#allocation4] sm:$0xff]
        %v576 = vld [vmem:[#allocation4 + $0x8] sm:$0xff]
        %v577 = vadd.f32 %v573, %v575
        %v578 = vadd.f32 %v574, %v576
        %v579 = vmul.f32 %v577, 0.01
        %v580 = vmul.f32 %v578, 0.01
        %v581 = vmax.f32 %v577, %v579
        %v582 = vmax.f32 %v578, %v580
        %v583 = vld [vmem:[%s1 + $0x20] sm:$0xf]
        %v584 = vld [vmem:[#allocation2 + $0x200] sm:$0xff]
        %v585 = vld [vmem:[#allocation2 + $0x210] sm:$0xff]
        %v586 = vld [vmem:[#allocation2 + $0x220] sm:$0xff]
        %v587 = vld [vmem:[#allocation2 + $0x230] sm:$0xff]
        %v588 = vld [vmem:[#allocation2 + $0x240] sm:$0xff]
        %v589 = vld [vmem:[#allocation2 + $0x250] sm:$0xff]
        %v590 = vld [vmem:[#allocation2 + $0x260] sm:$0xff]
        %v591 = vld [vmem:[#allocation2 + $0x270] sm:$0xff]
        %v592 = vld [vmem:[#allocation2 + $0x280] sm:$0xff]
        %v593 = vld [vmem:[#allocation2 + $0x290] sm:$0xff]
        %v594 = vld [vmem:[#allocation2 + $0x2a0] sm:$0xff]
        %v595 = vld [vmem:[#allocation2 + $0x2b0] sm:$0xff]
        %v596 = vld [vmem:[#allocation2 + $0x2c0] sm:$0xff]
        %v597 = vld [vmem:[#allocation2 + $0x2d0] sm:$0xff]
        %v598 = vld [vmem:[#allocation2 + $0x2e0] sm:$0xff]
        %v599 = vld [vmem:[#allocation2 + $0x2f0] sm:$0xff]
        %v600 = vld [vmem:[#allocation2 + $0x300] sm:$0xff]
        %v601 = vld [vmem:[#allocation2 + $0x310] sm:$0xff]
        %v602 = vld [vmem:[#allocation2 + $0x320] sm:$0xff]
        %v603 = vld [vmem:[#allocation2 + $0x330] sm:$0xff]
        %v604 = vld [vmem:[#allocation2 + $0x340] sm:$0xff]
        %v605 = vld [vmem:[#allocation2 + $0x350] sm:$0xff]
        %v606 = vld [vmem:[#allocation2 + $0x360] sm:$0xff]
        %v607 = vld [vmem:[#allocation2 + $0x370] sm:$0xff]
        %v608 = vld [vmem:[#allocation2 + $0x380] sm:$0xff]
        %v609 = vld [vmem:[#allocation2 + $0x390] sm:$0xff]
        %v610 = vld [vmem:[#allocation2 + $0x3a0] sm:$0xff]
        %v611 = vld [vmem:[#allocation2 + $0x3b0] sm:$0xff]
        %v612 = vld [vmem:[#allocation2 + $0x3c0] sm:$0xff]
        %v613 = vld [vmem:[#allocation2 + $0x3d0] sm:$0xff]
        %v614 = vld [vmem:[#allocation2 + $0x3e0] sm:$0xff]
        %v615 = vld [vmem:[#allocation2 + $0x3f0] sm:$0xff]
        %vm616 = vcmask 64512
        %v618 = vsel %vm616, %v583, 0
        %620 = vmatpush.msra.mxu0 0.0
        %621 = vmatpush.msra.mxu0 0.0
        %622 = vmatpush.msra.mxu0 0.0
        %623 = vmatpush.msra.mxu0 0.0
        %624 = vmatpush.msra.mxu0 0.0
        %625 = vmatpush.msra.mxu0 0.0
        %626 = vmatpush.msra.mxu0 0.0
        %627 = vmatpush.msra.mxu0 0.0
        %628 = vmatpush.msra.mxu0 0.0
        %629 = vmatpush.msra.mxu0 0.0
        %630 = vmatpush.msra.mxu0 0.0
        %631 = vmatpush.msra.mxu0 0.0
        %632 = vmatpush.msra.mxu0 0.0
        %633 = vmatpush.msra.mxu0 0.0
        %634 = vmatpush.msra.mxu0 0.0
        %635 = vmatpush.msra.mxu0 %v581
        %636 = vmatmul.f32.gmra.mxu0 %v618
        %v637 = vpop.f32.mrf.mxu0
        %v638 = vadd.f32 0.0, %v637
        %639 = vdwg.mxu0
        %640 = vmatpush.msra.mxu0 0.0
        %641 = vmatpush.msra.mxu0 0.0
        %642 = vmatpush.msra.mxu0 0.0
        %643 = vmatpush.msra.mxu0 0.0
        %644 = vmatpush.msra.mxu0 0.0
        %645 = vmatpush.msra.mxu0 0.0
        %646 = vmatpush.msra.mxu0 0.0
        %647 = vmatpush.msra.mxu0 0.0
        %648 = vmatpush.msra.mxu0 0.0
        %649 = vmatpush.msra.mxu0 0.0
        %650 = vmatpush.msra.mxu0 0.0
        %651 = vmatpush.msra.mxu0 0.0
        %652 = vmatpush.msra.mxu0 0.0
        %653 = vmatpush.msra.mxu0 0.0
        %654 = vmatpush.msra.mxu0 0.0
        %655 = vmatpush.msra.mxu0 %v582
        %656 = vmatmul.f32.gmra.mxu0 %v618
        %v657 = vpop.f32.mrf.mxu0
        %v658 = vadd.f32 0.0, %v657
        %659 = vdwg.mxu0
        %v660 = vld [vmem:[%s1 + $0x28] sm:$0xf]
        %v661 = vld [vmem:[#allocation2 + $0x400] sm:$0xff]
        %v662 = vld [vmem:[#allocation2 + $0x410] sm:$0xff]
        %v663 = vld [vmem:[#allocation2 + $0x420] sm:$0xff]
        %v664 = vld [vmem:[#allocation2 + $0x430] sm:$0xff]
        %v665 = vld [vmem:[#allocation2 + $0x440] sm:$0xff]
        %v666 = vld [vmem:[#allocation2 + $0x450] sm:$0xff]
        %v667 = vld [vmem:[#allocation2 + $0x460] sm:$0xff]
        %v668 = vld [vmem:[#allocation2 + $0x470] sm:$0xff]
        %v669 = vld [vmem:[#allocation2 + $0x480] sm:$0xff]
        %v670 = vld [vmem:[#allocation2 + $0x490] sm:$0xff]
        %v671 = vld [vmem:[#allocation2 + $0x4a0] sm:$0xff]
        %v672 = vld [vmem:[#allocation2 + $0x4b0] sm:$0xff]
        %v673 = vld [vmem:[#allocation2 + $0x4c0] sm:$0xff]
        %v674 = vld [vmem:[#allocation2 + $0x4d0] sm:$0xff]
        %v675 = vld [vmem:[#allocation2 + $0x4e0] sm:$0xff]
        %v676 = vld [vmem:[#allocation2 + $0x4f0] sm:$0xff]
        %v677 = vld [vmem:[#allocation2 + $0x500] sm:$0xff]
        %v678 = vld [vmem:[#allocation2 + $0x510] sm:$0xff]
        %v679 = vld [vmem:[#allocation2 + $0x520] sm:$0xff]
        %v680 = vld [vmem:[#allocation2 + $0x530] sm:$0xff]
        %v681 = vld [vmem:[#allocation2 + $0x540] sm:$0xff]
        %v682 = vld [vmem:[#allocation2 + $0x550] sm:$0xff]
        %v683 = vld [vmem:[#allocation2 + $0x560] sm:$0xff]
        %v684 = vld [vmem:[#allocation2 + $0x570] sm:$0xff]
        %v685 = vld [vmem:[#allocation2 + $0x580] sm:$0xff]
        %v686 = vld [vmem:[#allocation2 + $0x590] sm:$0xff]
        %v687 = vld [vmem:[#allocation2 + $0x5a0] sm:$0xff]
        %v688 = vld [vmem:[#allocation2 + $0x5b0] sm:$0xff]
        %v689 = vld [vmem:[#allocation2 + $0x5c0] sm:$0xff]
        %v690 = vld [vmem:[#allocation2 + $0x5d0] sm:$0xff]
        %v691 = vld [vmem:[#allocation2 + $0x5e0] sm:$0xff]
        %v692 = vld [vmem:[#allocation2 + $0x5f0] sm:$0xff]
        %v694 = vsel %vm616, %v660, 0
        %696 = vmatpush.msra.mxu0 0.0
        %697 = vmatpush.msra.mxu0 0.0
        %698 = vmatpush.msra.mxu0 0.0
        %699 = vmatpush.msra.mxu0 0.0
        %700 = vmatpush.msra.mxu0 0.0
        %701 = vmatpush.msra.mxu0 0.0
        %702 = vmatpush.msra.mxu0 0.0
        %703 = vmatpush.msra.mxu0 0.0
        %704 = vmatpush.msra.mxu0 0.0
        %705 = vmatpush.msra.mxu0 0.0
        %706 = vmatpush.msra.mxu0 0.0
        %707 = vmatpush.msra.mxu0 0.0
        %708 = vmatpush.msra.mxu0 0.0
        %709 = vmatpush.msra.mxu0 0.0
        %710 = vmatpush.msra.mxu0 0.0
        %711 = vmatpush.msra.mxu0 %v581
        %712 = vmatmul.f32.gmra.mxu0 %v694
        %v713 = vpop.f32.mrf.mxu0
        %v714 = vadd.f32 0.0, %v713
        %715 = vdwg.mxu0
        %716 = vmatpush.msra.mxu0 0.0
        %717 = vmatpush.msra.mxu0 0.0
        %718 = vmatpush.msra.mxu0 0.0
        %719 = vmatpush.msra.mxu0 0.0
        %720 = vmatpush.msra.mxu0 0.0
        %721 = vmatpush.msra.mxu0 0.0
        %722 = vmatpush.msra.mxu0 0.0
        %723 = vmatpush.msra.mxu0 0.0
        %724 = vmatpush.msra.mxu0 0.0
        %725 = vmatpush.msra.mxu0 0.0
        %726 = vmatpush.msra.mxu0 0.0
        %727 = vmatpush.msra.mxu0 0.0
        %728 = vmatpush.msra.mxu0 0.0
        %729 = vmatpush.msra.mxu0 0.0
        %730 = vmatpush.msra.mxu0 0.0
        %731 = vmatpush.msra.mxu0 %v582
        %732 = vmatmul.f32.gmra.mxu0 %v694
        %v733 = vpop.f32.mrf.mxu0
        %v734 = vadd.f32 0.0, %v733
        %735 = vdwg.mxu0
        %736 = vmatpush.msra.mxu0 %v676
        %737 = vmatpush.msra.mxu0 %v675
        %738 = vmatpush.msra.mxu0 %v674
        %739 = vmatpush.msra.mxu0 %v673
        %740 = vmatpush.msra.mxu0 %v672
        %741 = vmatpush.msra.mxu0 %v671
        %742 = vmatpush.msra.mxu0 %v670
        %743 = vmatpush.msra.mxu0 %v669
        %744 = vmatpush.msra.mxu0 %v668
        %745 = vmatpush.msra.mxu0 %v667
        %746 = vmatpush.msra.mxu0 %v666
        %747 = vmatpush.msra.mxu0 %v665
        %748 = vmatpush.msra.mxu0 %v664
        %749 = vmatpush.msra.mxu0 %v663
        %750 = vmatpush.msra.mxu0 %v662
        %751 = vmatpush.msra.mxu0 %v661
        %752 = vmatmul.f32.gmra.mxu0 %v714
        %v753 = vpop.f32.mrf.mxu0
        %v754 = vadd.f32 0.0, %v753
        %755 = vdwg.mxu0
        %756 = vmatpush.msra.mxu0 %v692
        %757 = vmatpush.msra.mxu0 %v691
        %758 = vmatpush.msra.mxu0 %v690
        %759 = vmatpush.msra.mxu0 %v689
        %760 = vmatpush.msra.mxu0 %v688
        %761 = vmatpush.msra.mxu0 %v687
        %762 = vmatpush.msra.mxu0 %v686
        %763 = vmatpush.msra.mxu0 %v685
        %764 = vmatpush.msra.mxu0 %v684
        %765 = vmatpush.msra.mxu0 %v683
        %766 = vmatpush.msra.mxu0 %v682
        %767 = vmatpush.msra.mxu0 %v681
        %768 = vmatpush.msra.mxu0 %v680
        %769 = vmatpush.msra.mxu0 %v679
        %770 = vmatpush.msra.mxu0 %v678
        %771 = vmatpush.msra.mxu0 %v677
        %772 = vmatmul.f32.gmra.mxu0 %v734
        %v773 = vpop.f32.mrf.mxu0
        %v774 = vadd.f32 %v754, %v773
        %775 = vdwg.mxu0
        %776 = vmatpush.msra.mxu0 %v599
        %777 = vmatpush.msra.mxu0 %v598
        %778 = vmatpush.msra.mxu0 %v597
        %779 = vmatpush.msra.mxu0 %v596
        %780 = vmatpush.msra.mxu0 %v595
        %781 = vmatpush.msra.mxu0 %v594
        %782 = vmatpush.msra.mxu0 %v593
        %783 = vmatpush.msra.mxu0 %v592
        %784 = vmatpush.msra.mxu0 %v591
        %785 = vmatpush.msra.mxu0 %v590
        %786 = vmatpush.msra.mxu0 %v589
        %787 = vmatpush.msra.mxu0 %v588
        %788 = vmatpush.msra.mxu0 %v587
        %789 = vmatpush.msra.mxu0 %v586
        %790 = vmatpush.msra.mxu0 %v585
        %791 = vmatpush.msra.mxu0 %v584
        %792 = vmatmul.f32.gmra.mxu0 %v638
        %v793 = vpop.f32.mrf.mxu0
        %v794 = vadd.f32 %v774, %v793
        %795 = vdwg.mxu0
        %796 = vmatpush.msra.mxu0 %v615
        %797 = vmatpush.msra.mxu0 %v614
        %798 = vmatpush.msra.mxu0 %v613
        %799 = vmatpush.msra.mxu0 %v612
        %800 = vmatpush.msra.mxu0 %v611
        %801 = vmatpush.msra.mxu0 %v610
        %802 = vmatpush.msra.mxu0 %v609
        %803 = vmatpush.msra.mxu0 %v608
        %804 = vmatpush.msra.mxu0 %v607
        %805 = vmatpush.msra.mxu0 %v606
        %806 = vmatpush.msra.mxu0 %v605
        %807 = vmatpush.msra.mxu0 %v604
        %808 = vmatpush.msra.mxu0 %v603
        %809 = vmatpush.msra.mxu0 %v602
        %810 = vmatpush.msra.mxu0 %v601
        %811 = vmatpush.msra.mxu0 %v600
        %812 = vmatmul.f32.gmra.mxu0 %v658
        %v813 = vpop.f32.mrf.mxu0
        %v814 = vadd.f32 %v794, %v813
        %815 = vdwg.mxu0
        %v816 = vld [vmem:[%s1 + $0x30] sm:$0xf]
        %v817 = vld [vmem:[#allocation2 + $0x600] sm:$0xff]
        %v818 = vld [vmem:[#allocation2 + $0x610] sm:$0xff]
        %v819 = vld [vmem:[#allocation2 + $0x620] sm:$0xff]
        %v820 = vld [vmem:[#allocation2 + $0x630] sm:$0xff]
        %v821 = vld [vmem:[#allocation2 + $0x640] sm:$0xff]
        %v822 = vld [vmem:[#allocation2 + $0x650] sm:$0xff]
        %v823 = vld [vmem:[#allocation2 + $0x660] sm:$0xff]
        %v824 = vld [vmem:[#allocation2 + $0x670] sm:$0xff]
        %v825 = vld [vmem:[#allocation2 + $0x680] sm:$0xff]
        %v826 = vld [vmem:[#allocation2 + $0x690] sm:$0xff]
        %v827 = vld [vmem:[#allocation2 + $0x6a0] sm:$0xff]
        %v828 = vld [vmem:[#allocation2 + $0x6b0] sm:$0xff]
        %v829 = vld [vmem:[#allocation2 + $0x6c0] sm:$0xff]
        %v830 = vld [vmem:[#allocation2 + $0x6d0] sm:$0xff]
        %v831 = vld [vmem:[#allocation2 + $0x6e0] sm:$0xff]
        %v832 = vld [vmem:[#allocation2 + $0x6f0] sm:$0xff]
        %v833 = vld [vmem:[#allocation2 + $0x700] sm:$0xff]
        %v834 = vld [vmem:[#allocation2 + $0x710] sm:$0xff]
        %v835 = vld [vmem:[#allocation2 + $0x720] sm:$0xff]
        %v836 = vld [vmem:[#allocation2 + $0x730] sm:$0xff]
        %v837 = vld [vmem:[#allocation2 + $0x740] sm:$0xff]
        %v838 = vld [vmem:[#allocation2 + $0x750] sm:$0xff]
        %v839 = vld [vmem:[#allocation2 + $0x760] sm:$0xff]
        %v840 = vld [vmem:[#allocation2 + $0x770] sm:$0xff]
        %v841 = vld [vmem:[#allocation2 + $0x780] sm:$0xff]
        %v842 = vld [vmem:[#allocation2 + $0x790] sm:$0xff]
        %v843 = vld [vmem:[#allocation2 + $0x7a0] sm:$0xff]
        %v844 = vld [vmem:[#allocation2 + $0x7b0] sm:$0xff]
        %v845 = vld [vmem:[#allocation2 + $0x7c0] sm:$0xff]
        %v846 = vld [vmem:[#allocation2 + $0x7d0] sm:$0xff]
        %v847 = vld [vmem:[#allocation2 + $0x7e0] sm:$0xff]
        %v848 = vld [vmem:[#allocation2 + $0x7f0] sm:$0xff]
        %v850 = vsel %vm616, %v816, 0
        %852 = vmatpush.msra.mxu0 0.0
        %853 = vmatpush.msra.mxu0 0.0
        %854 = vmatpush.msra.mxu0 0.0
        %855 = vmatpush.msra.mxu0 0.0
        %856 = vmatpush.msra.mxu0 0.0
        %857 = vmatpush.msra.mxu0 0.0
        %858 = vmatpush.msra.mxu0 0.0
        %859 = vmatpush.msra.mxu0 0.0
        %860 = vmatpush.msra.mxu0 0.0
        %861 = vmatpush.msra.mxu0 0.0
        %862 = vmatpush.msra.mxu0 0.0
        %863 = vmatpush.msra.mxu0 0.0
        %864 = vmatpush.msra.mxu0 0.0
        %865 = vmatpush.msra.mxu0 0.0
        %866 = vmatpush.msra.mxu0 0.0
        %867 = vmatpush.msra.mxu0 %v581
        %868 = vmatmul.f32.gmra.mxu0 %v850
        %v869 = vpop.f32.mrf.mxu0
        %v870 = vadd.f32 0.0, %v869
        %871 = vdwg.mxu0
        %872 = vmatpush.msra.mxu0 0.0
        %873 = vmatpush.msra.mxu0 0.0
        %874 = vmatpush.msra.mxu0 0.0
        %875 = vmatpush.msra.mxu0 0.0
        %876 = vmatpush.msra.mxu0 0.0
        %877 = vmatpush.msra.mxu0 0.0
        %878 = vmatpush.msra.mxu0 0.0
        %879 = vmatpush.msra.mxu0 0.0
        %880 = vmatpush.msra.mxu0 0.0
        %881 = vmatpush.msra.mxu0 0.0
        %882 = vmatpush.msra.mxu0 0.0
        %883 = vmatpush.msra.mxu0 0.0
        %884 = vmatpush.msra.mxu0 0.0
        %885 = vmatpush.msra.mxu0 0.0
        %886 = vmatpush.msra.mxu0 0.0
        %887 = vmatpush.msra.mxu0 %v582
        %888 = vmatmul.f32.gmra.mxu0 %v850
        %v889 = vpop.f32.mrf.mxu0
        %v890 = vadd.f32 0.0, %v889
        %891 = vdwg.mxu0
        %892 = vmatpush.msra.mxu0 %v832
        %893 = vmatpush.msra.mxu0 %v831
        %894 = vmatpush.msra.mxu0 %v830
        %895 = vmatpush.msra.mxu0 %v829
        %896 = vmatpush.msra.mxu0 %v828
        %897 = vmatpush.msra.mxu0 %v827
        %898 = vmatpush.msra.mxu0 %v826
        %899 = vmatpush.msra.mxu0 %v825
        %900 = vmatpush.msra.mxu0 %v824
        %901 = vmatpush.msra.mxu0 %v823
        %902 = vmatpush.msra.mxu0 %v822
        %903 = vmatpush.msra.mxu0 %v821
        %904 = vmatpush.msra.mxu0 %v820
        %905 = vmatpush.msra.mxu0 %v819
        %906 = vmatpush.msra.mxu0 %v818
        %907 = vmatpush.msra.mxu0 %v817
        %908 = vmatmul.f32.gmra.mxu0 %v870
        %v909 = vpop.f32.mrf.mxu0
        %v910 = vadd.f32 0.0, %v909
        %911 = vdwg.mxu0
        %912 = vmatpush.msra.mxu0 %v848
        %913 = vmatpush.msra.mxu0 %v847
        %914 = vmatpush.msra.mxu0 %v846
        %915 = vmatpush.msra.mxu0 %v845
        %916 = vmatpush.msra.mxu0 %v844
        %917 = vmatpush.msra.mxu0 %v843
        %918 = vmatpush.msra.mxu0 %v842
        %919 = vmatpush.msra.mxu0 %v841
        %920 = vmatpush.msra.mxu0 %v840
        %921 = vmatpush.msra.mxu0 %v839
        %922 = vmatpush.msra.mxu0 %v838
        %923 = vmatpush.msra.mxu0 %v837
        %924 = vmatpush.msra.mxu0 %v836
        %925 = vmatpush.msra.mxu0 %v835
        %926 = vmatpush.msra.mxu0 %v834
        %927 = vmatpush.msra.mxu0 %v833
        %928 = vmatmul.f32.gmra.mxu0 %v890
        %v929 = vpop.f32.mrf.mxu0
        %v930 = vadd.f32 %v910, %v929
        %931 = vdwg.mxu0
        %v932 = vadd.f32 %v814, %v930
        %v933 = vld [vmem:[%s1 + $0x38] sm:$0xf]
        %v934 = vld [vmem:[#allocation2 + $0x800] sm:$0xff]
        %v935 = vld [vmem:[#allocation2 + $0x810] sm:$0xff]
        %v936 = vld [vmem:[#allocation2 + $0x820] sm:$0xff]
        %v937 = vld [vmem:[#allocation2 + $0x830] sm:$0xff]
        %v938 = vld [vmem:[#allocation2 + $0x840] sm:$0xff]
        %v939 = vld [vmem:[#allocation2 + $0x850] sm:$0xff]
        %v940 = vld [vmem:[#allocation2 + $0x860] sm:$0xff]
        %v941 = vld [vmem:[#allocation2 + $0x870] sm:$0xff]
        %v942 = vld [vmem:[#allocation2 + $0x880] sm:$0xff]
        %v943 = vld [vmem:[#allocation2 + $0x890] sm:$0xff]
        %v944 = vld [vmem:[#allocation2 + $0x8a0] sm:$0xff]
        %v945 = vld [vmem:[#allocation2 + $0x8b0] sm:$0xff]
        %v946 = vld [vmem:[#allocation2 + $0x8c0] sm:$0xff]
        %v947 = vld [vmem:[#allocation2 + $0x8d0] sm:$0xff]
        %v948 = vld [vmem:[#allocation2 + $0x8e0] sm:$0xff]
        %v949 = vld [vmem:[#allocation2 + $0x8f0] sm:$0xff]
        %v950 = vld [vmem:[#allocation2 + $0x900] sm:$0xff]
        %v951 = vld [vmem:[#allocation2 + $0x910] sm:$0xff]
        %v952 = vld [vmem:[#allocation2 + $0x920] sm:$0xff]
        %v953 = vld [vmem:[#allocation2 + $0x930] sm:$0xff]
        %v954 = vld [vmem:[#allocation2 + $0x940] sm:$0xff]
        %v955 = vld [vmem:[#allocation2 + $0x950] sm:$0xff]
        %v956 = vld [vmem:[#allocation2 + $0x960] sm:$0xff]
        %v957 = vld [vmem:[#allocation2 + $0x970] sm:$0xff]
        %v958 = vld [vmem:[#allocation2 + $0x980] sm:$0xff]
        %v959 = vld [vmem:[#allocation2 + $0x990] sm:$0xff]
        %v960 = vld [vmem:[#allocation2 + $0x9a0] sm:$0xff]
        %v961 = vld [vmem:[#allocation2 + $0x9b0] sm:$0xff]
        %v962 = vld [vmem:[#allocation2 + $0x9c0] sm:$0xff]
        %v963 = vld [vmem:[#allocation2 + $0x9d0] sm:$0xff]
        %v964 = vld [vmem:[#allocation2 + $0x9e0] sm:$0xff]
        %v965 = vld [vmem:[#allocation2 + $0x9f0] sm:$0xff]
        %v967 = vsel %vm616, %v933, 0
        %969 = vmatpush.msra.mxu0 0.0
        %970 = vmatpush.msra.mxu0 0.0
        %971 = vmatpush.msra.mxu0 0.0
        %972 = vmatpush.msra.mxu0 0.0
        %973 = vmatpush.msra.mxu0 0.0
        %974 = vmatpush.msra.mxu0 0.0
        %975 = vmatpush.msra.mxu0 0.0
        %976 = vmatpush.msra.mxu0 0.0
        %977 = vmatpush.msra.mxu0 0.0
        %978 = vmatpush.msra.mxu0 0.0
        %979 = vmatpush.msra.mxu0 0.0
        %980 = vmatpush.msra.mxu0 0.0
        %981 = vmatpush.msra.mxu0 0.0
        %982 = vmatpush.msra.mxu0 0.0
        %983 = vmatpush.msra.mxu0 0.0
        %984 = vmatpush.msra.mxu0 %v581
        %985 = vmatmul.f32.gmra.mxu0 %v967
        %v986 = vpop.f32.mrf.mxu0
        %v987 = vadd.f32 0.0, %v986
        %988 = vdwg.mxu0
        %989 = vmatpush.msra.mxu0 0.0
        %990 = vmatpush.msra.mxu0 0.0
        %991 = vmatpush.msra.mxu0 0.0
        %992 = vmatpush.msra.mxu0 0.0
        %993 = vmatpush.msra.mxu0 0.0
        %994 = vmatpush.msra.mxu0 0.0
        %995 = vmatpush.msra.mxu0 0.0
        %996 = vmatpush.msra.mxu0 0.0
        %997 = vmatpush.msra.mxu0 0.0
        %998 = vmatpush.msra.mxu0 0.0
        %999 = vmatpush.msra.mxu0 0.0
        %1000 = vmatpush.msra.mxu0 0.0
        %1001 = vmatpush.msra.mxu0 0.0
        %1002 = vmatpush.msra.mxu0 0.0
        %1003 = vmatpush.msra.mxu0 0.0
        %1004 = vmatpush.msra.mxu0 %v582
        %1005 = vmatmul.f32.gmra.mxu0 %v967
        %v1006 = vpop.f32.mrf.mxu0
        %v1007 = vadd.f32 0.0, %v1006
        %1008 = vdwg.mxu0
        %1009 = vmatpush.msra.mxu0 %v949
        %1010 = vmatpush.msra.mxu0 %v948
        %1011 = vmatpush.msra.mxu0 %v947
        %1012 = vmatpush.msra.mxu0 %v946
        %1013 = vmatpush.msra.mxu0 %v945
        %1014 = vmatpush.msra.mxu0 %v944
        %1015 = vmatpush.msra.mxu0 %v943
        %1016 = vmatpush.msra.mxu0 %v942
        %1017 = vmatpush.msra.mxu0 %v941
        %1018 = vmatpush.msra.mxu0 %v940
        %1019 = vmatpush.msra.mxu0 %v939
        %1020 = vmatpush.msra.mxu0 %v938
        %1021 = vmatpush.msra.mxu0 %v937
        %1022 = vmatpush.msra.mxu0 %v936
        %1023 = vmatpush.msra.mxu0 %v935
        %1024 = vmatpush.msra.mxu0 %v934
        %1025 = vmatmul.f32.gmra.mxu0 %v987
        %v1026 = vpop.f32.mrf.mxu0
        %v1027 = vadd.f32 0.0, %v1026
        %1028 = vdwg.mxu0
        %1029 = vmatpush.msra.mxu0 %v965
        %1030 = vmatpush.msra.mxu0 %v964
        %1031 = vmatpush.msra.mxu0 %v963
        %1032 = vmatpush.msra.mxu0 %v962
        %1033 = vmatpush.msra.mxu0 %v961
        %1034 = vmatpush.msra.mxu0 %v960
        %1035 = vmatpush.msra.mxu0 %v959
        %1036 = vmatpush.msra.mxu0 %v958
        %1037 = vmatpush.msra.mxu0 %v957
        %1038 = vmatpush.msra.mxu0 %v956
        %1039 = vmatpush.msra.mxu0 %v955
        %1040 = vmatpush.msra.mxu0 %v954
        %1041 = vmatpush.msra.mxu0 %v953
        %1042 = vmatpush.msra.mxu0 %v952
        %1043 = vmatpush.msra.mxu0 %v951
        %1044 = vmatpush.msra.mxu0 %v950
        %1045 = vmatmul.f32.gmra.mxu0 %v1007
        %v1046 = vpop.f32.mrf.mxu0
        %v1047 = vadd.f32 %v1027, %v1046
        %1048 = vdwg.mxu0
        %v1049 = vadd.f32 %v932, %v1047
        %v1050 = vld [vmem:[#allocation4 + $0x10] sm:$0xf]
        %v1051 = vadd.f32 %v1049, %v1050
        %v1052 = vmul.f32 %v1051, 0.01
        %v1053 = vmax.f32 %v1051, %v1052
        %v1054 = vld [vmem:[%s1 + $0x40] sm:$0xff]
        %v1055 = vld [vmem:[#allocation2 + $0xa00] sm:$0xff]
        %v1056 = vld [vmem:[#allocation2 + $0xa10] sm:$0xff]
        %v1057 = vld [vmem:[#allocation2 + $0xa20] sm:$0xff]
        %v1058 = vld [vmem:[#allocation2 + $0xa30] sm:$0xff]
        %v1059 = vld [vmem:[#allocation2 + $0xa40] sm:$0xff]
        %v1060 = vld [vmem:[#allocation2 + $0xa50] sm:$0xff]
        %v1061 = vld [vmem:[#allocation2 + $0xa60] sm:$0xff]
        %v1062 = vld [vmem:[#allocation2 + $0xa70] sm:$0xff]
        %vm1063 = vcmask 31744
        %v1065 = vsel %vm1063, %v1054, 0
        %vm1067 = vcmask 1043456
        %v1069 = vsel %vm1067, %v1053, 0
        %1071 = vmatpush.msra.mxu0 0.0
        %1072 = vmatpush.msra.mxu0 0.0
        %1073 = vmatpush.msra.mxu0 0.0
        %1074 = vmatpush.msra.mxu0 0.0
        %1075 = vmatpush.msra.mxu0 0.0
        %1076 = vmatpush.msra.mxu0 0.0
        %1077 = vmatpush.msra.mxu0 0.0
        %1078 = vmatpush.msra.mxu0 0.0
        %1079 = vmatpush.msra.mxu0 0.0
        %1080 = vmatpush.msra.mxu0 0.0
        %1081 = vmatpush.msra.mxu0 0.0
        %1082 = vmatpush.msra.mxu0 0.0
        %1083 = vmatpush.msra.mxu0 0.0
        %1084 = vmatpush.msra.mxu0 0.0
        %1085 = vmatpush.msra.mxu0 0.0
        %1086 = vmatpush.msra.mxu0 %v1069
        %1087 = vmatmul.f32.gmra.mxu0 %v1065
        %v1088 = vpop.f32.mrf.mxu0
        %v1089 = vadd.f32 0.0, %v1088
        %1090 = vdwg.mxu0
        %v1091 = vld [vmem:[%s1 + $0x48] sm:$0xff]
        %v1092 = vld [vmem:[#allocation2 + $0xa80] sm:$0xff]
        %v1093 = vld [vmem:[#allocation2 + $0xa90] sm:$0xff]
        %v1094 = vld [vmem:[#allocation2 + $0xaa0] sm:$0xff]
        %v1095 = vld [vmem:[#allocation2 + $0xab0] sm:$0xff]
        %v1096 = vld [vmem:[#allocation2 + $0xac0] sm:$0xff]
        %v1097 = vld [vmem:[#allocation2 + $0xad0] sm:$0xff]
        %v1098 = vld [vmem:[#allocation2 + $0xae0] sm:$0xff]
        %v1099 = vld [vmem:[#allocation2 + $0xaf0] sm:$0xff]
        %v1101 = vsel %vm1063, %v1091, 0
        %1103 = vmatpush.msra.mxu0 0.0
        %1104 = vmatpush.msra.mxu0 0.0
        %1105 = vmatpush.msra.mxu0 0.0
        %1106 = vmatpush.msra.mxu0 0.0
        %1107 = vmatpush.msra.mxu0 0.0
        %1108 = vmatpush.msra.mxu0 0.0
        %1109 = vmatpush.msra.mxu0 0.0
        %1110 = vmatpush.msra.mxu0 0.0
        %1111 = vmatpush.msra.mxu0 0.0
        %1112 = vmatpush.msra.mxu0 0.0
        %1113 = vmatpush.msra.mxu0 0.0
        %1114 = vmatpush.msra.mxu0 0.0
        %1115 = vmatpush.msra.mxu0 0.0
        %1116 = vmatpush.msra.mxu0 0.0
        %1117 = vmatpush.msra.mxu0 0.0
        %1118 = vmatpush.msra.mxu0 %v1069
        %1119 = vmatmul.f32.gmra.mxu0 %v1101
        %v1120 = vpop.f32.mrf.mxu0
        %v1121 = vadd.f32 0.0, %v1120
        %1122 = vdwg.mxu0
        %v1124 = vsel %vm318, %v1121, 0
        %1126 = vmatpush.msra.mxu0 0.0
        %1127 = vmatpush.msra.mxu0 0.0
        %1128 = vmatpush.msra.mxu0 0.0
        %1129 = vmatpush.msra.mxu0 0.0
        %1130 = vmatpush.msra.mxu0 0.0
        %1131 = vmatpush.msra.mxu0 0.0
        %1132 = vmatpush.msra.mxu0 0.0
        %1133 = vmatpush.msra.mxu0 0.0
        %1134 = vmatpush.msra.mxu0 %v1099
        %1135 = vmatpush.msra.mxu0 %v1098
        %1136 = vmatpush.msra.mxu0 %v1097
        %1137 = vmatpush.msra.mxu0 %v1096
        %1138 = vmatpush.msra.mxu0 %v1095
        %1139 = vmatpush.msra.mxu0 %v1094
        %1140 = vmatpush.msra.mxu0 %v1093
        %1141 = vmatpush.msra.mxu0 %v1092
        %1142 = vmatmul.f32.gmra.mxu0 %v1124
        %v1143 = vpop.f32.mrf.mxu0
        %v1144 = vadd.f32 0.0, %v1143
        %1145 = vdwg.mxu0
        %v1147 = vsel %vm318, %v1089, 0
        %1149 = vmatpush.msra.mxu0 0.0
        %1150 = vmatpush.msra.mxu0 0.0
        %1151 = vmatpush.msra.mxu0 0.0
        %1152 = vmatpush.msra.mxu0 0.0
        %1153 = vmatpush.msra.mxu0 0.0
        %1154 = vmatpush.msra.mxu0 0.0
        %1155 = vmatpush.msra.mxu0 0.0
        %1156 = vmatpush.msra.mxu0 0.0
        %1157 = vmatpush.msra.mxu0 %v1062
        %1158 = vmatpush.msra.mxu0 %v1061
        %1159 = vmatpush.msra.mxu0 %v1060
        %1160 = vmatpush.msra.mxu0 %v1059
        %1161 = vmatpush.msra.mxu0 %v1058
        %1162 = vmatpush.msra.mxu0 %v1057
        %1163 = vmatpush.msra.mxu0 %v1056
        %1164 = vmatpush.msra.mxu0 %v1055
        %1165 = vmatmul.f32.gmra.mxu0 %v1147
        %v1166 = vpop.f32.mrf.mxu0
        %v1167 = vadd.f32 %v1144, %v1166
        %1168 = vdwg.mxu0
        %v1169 = vld [vmem:[%s1 + $0x50] sm:$0xff]
        %v1170 = vld [vmem:[#allocation2 + $0xb00] sm:$0xff]
        %v1171 = vld [vmem:[#allocation2 + $0xb10] sm:$0xff]
        %v1172 = vld [vmem:[#allocation2 + $0xb20] sm:$0xff]
        %v1173 = vld [vmem:[#allocation2 + $0xb30] sm:$0xff]
        %v1174 = vld [vmem:[#allocation2 + $0xb40] sm:$0xff]
        %v1175 = vld [vmem:[#allocation2 + $0xb50] sm:$0xff]
        %v1176 = vld [vmem:[#allocation2 + $0xb60] sm:$0xff]
        %v1177 = vld [vmem:[#allocation2 + $0xb70] sm:$0xff]
        %v1179 = vsel %vm1063, %v1169, 0
        %1181 = vmatpush.msra.mxu0 0.0
        %1182 = vmatpush.msra.mxu0 0.0
        %1183 = vmatpush.msra.mxu0 0.0
        %1184 = vmatpush.msra.mxu0 0.0
        %1185 = vmatpush.msra.mxu0 0.0
        %1186 = vmatpush.msra.mxu0 0.0
        %1187 = vmatpush.msra.mxu0 0.0
        %1188 = vmatpush.msra.mxu0 0.0
        %1189 = vmatpush.msra.mxu0 0.0
        %1190 = vmatpush.msra.mxu0 0.0
        %1191 = vmatpush.msra.mxu0 0.0
        %1192 = vmatpush.msra.mxu0 0.0
        %1193 = vmatpush.msra.mxu0 0.0
        %1194 = vmatpush.msra.mxu0 0.0
        %1195 = vmatpush.msra.mxu0 0.0
        %1196 = vmatpush.msra.mxu0 %v1069
        %1197 = vmatmul.f32.gmra.mxu0 %v1179
        %v1198 = vpop.f32.mrf.mxu0
        %v1199 = vadd.f32 0.0, %v1198
        %1200 = vdwg.mxu0
        %v1202 = vsel %vm318, %v1199, 0
        %1204 = vmatpush.msra.mxu0 0.0
        %1205 = vmatpush.msra.mxu0 0.0
        %1206 = vmatpush.msra.mxu0 0.0
        %1207 = vmatpush.msra.mxu0 0.0
        %1208 = vmatpush.msra.mxu0 0.0
        %1209 = vmatpush.msra.mxu0 0.0
        %1210 = vmatpush.msra.mxu0 0.0
        %1211 = vmatpush.msra.mxu0 0.0
        %1212 = vmatpush.msra.mxu0 %v1177
        %1213 = vmatpush.msra.mxu0 %v1176
        %1214 = vmatpush.msra.mxu0 %v1175
        %1215 = vmatpush.msra.mxu0 %v1174
        %1216 = vmatpush.msra.mxu0 %v1173
        %1217 = vmatpush.msra.mxu0 %v1172
        %1218 = vmatpush.msra.mxu0 %v1171
        %1219 = vmatpush.msra.mxu0 %v1170
        %1220 = vmatmul.f32.gmra.mxu0 %v1202
        %v1221 = vpop.f32.mrf.mxu0
        %v1222 = vadd.f32 0.0, %v1221
        %1223 = vdwg.mxu0
        %v1224 = vadd.f32 %v1167, %v1222
        %v1225 = vld [vmem:[%s1 + $0x58] sm:$0xff]
        %v1226 = vld [vmem:[#allocation2 + $0xb80] sm:$0xff]
        %v1227 = vld [vmem:[#allocation2 + $0xb90] sm:$0xff]
        %v1228 = vld [vmem:[#allocation2 + $0xba0] sm:$0xff]
        %v1229 = vld [vmem:[#allocation2 + $0xbb0] sm:$0xff]
        %v1230 = vld [vmem:[#allocation2 + $0xbc0] sm:$0xff]
        %v1231 = vld [vmem:[#allocation2 + $0xbd0] sm:$0xff]
        %v1232 = vld [vmem:[#allocation2 + $0xbe0] sm:$0xff]
        %v1233 = vld [vmem:[#allocation2 + $0xbf0] sm:$0xff]
        %v1235 = vsel %vm1063, %v1225, 0
        %1237 = vmatpush.msra.mxu0 0.0
        %1238 = vmatpush.msra.mxu0 0.0
        %1239 = vmatpush.msra.mxu0 0.0
        %1240 = vmatpush.msra.mxu0 0.0
        %1241 = vmatpush.msra.mxu0 0.0
        %1242 = vmatpush.msra.mxu0 0.0
        %1243 = vmatpush.msra.mxu0 0.0
        %1244 = vmatpush.msra.mxu0 0.0
        %1245 = vmatpush.msra.mxu0 0.0
        %1246 = vmatpush.msra.mxu0 0.0
        %1247 = vmatpush.msra.mxu0 0.0
        %1248 = vmatpush.msra.mxu0 0.0
        %1249 = vmatpush.msra.mxu0 0.0
        %1250 = vmatpush.msra.mxu0 0.0
        %1251 = vmatpush.msra.mxu0 0.0
        %1252 = vmatpush.msra.mxu0 %v1069
        %1253 = vmatmul.f32.gmra.mxu0 %v1235
        %v1254 = vpop.f32.mrf.mxu0
        %v1255 = vadd.f32 0.0, %v1254
        %1256 = vdwg.mxu0
        %v1258 = vsel %vm318, %v1255, 0
        %1260 = vmatpush.msra.mxu0 0.0
        %1261 = vmatpush.msra.mxu0 0.0
        %1262 = vmatpush.msra.mxu0 0.0
        %1263 = vmatpush.msra.mxu0 0.0
        %1264 = vmatpush.msra.mxu0 0.0
        %1265 = vmatpush.msra.mxu0 0.0
        %1266 = vmatpush.msra.mxu0 0.0
        %1267 = vmatpush.msra.mxu0 0.0
        %1268 = vmatpush.msra.mxu0 %v1233
        %1269 = vmatpush.msra.mxu0 %v1232
        %1270 = vmatpush.msra.mxu0 %v1231
        %1271 = vmatpush.msra.mxu0 %v1230
        %1272 = vmatpush.msra.mxu0 %v1229
        %1273 = vmatpush.msra.mxu0 %v1228
        %1274 = vmatpush.msra.mxu0 %v1227
        %1275 = vmatpush.msra.mxu0 %v1226
        %1276 = vmatmul.f32.gmra.mxu0 %v1258
        %v1277 = vpop.f32.mrf.mxu0
        %v1278 = vadd.f32 0.0, %v1277
        %1279 = vdwg.mxu0
        %v1280 = vadd.f32 %v1224, %v1278
        %v1281 = vld [vmem:[#allocation4 + $0x20] sm:$0xff]
        %v1282 = vadd.f32 %v1280, %v1281
        %v1283 = vmul.f32 %v1282, 0.01
        %v1284 = vmax.f32 %v1282, %v1283
        %v1285 = vld [vmem:[%s1 + $0x60] sm:$0xf]
        %v1286 = vld [vmem:[#allocation2 + $0xc00] sm:$0xff]
        %v1287 = vld [vmem:[#allocation2 + $0xc10] sm:$0xff]
        %v1288 = vld [vmem:[#allocation2 + $0xc20] sm:$0xff]
        %v1289 = vld [vmem:[#allocation2 + $0xc30] sm:$0xff]
        %v1291 = vsel %vm616, %v1285, 0
        %1293 = vmatpush.msra.mxu0 0.0
        %1294 = vmatpush.msra.mxu0 0.0
        %1295 = vmatpush.msra.mxu0 0.0
        %1296 = vmatpush.msra.mxu0 0.0
        %1297 = vmatpush.msra.mxu0 0.0
        %1298 = vmatpush.msra.mxu0 0.0
        %1299 = vmatpush.msra.mxu0 0.0
        %1300 = vmatpush.msra.mxu0 0.0
        %1301 = vmatpush.msra.mxu0 0.0
        %1302 = vmatpush.msra.mxu0 0.0
        %1303 = vmatpush.msra.mxu0 0.0
        %1304 = vmatpush.msra.mxu0 0.0
        %1305 = vmatpush.msra.mxu0 0.0
        %1306 = vmatpush.msra.mxu0 0.0
        %1307 = vmatpush.msra.mxu0 0.0
        %1308 = vmatpush.msra.mxu0 %v1284
        %1309 = vmatmul.f32.gmra.mxu0 %v1291
        %v1310 = vpop.f32.mrf.mxu0
        %v1311 = vadd.f32 0.0, %v1310
        %1312 = vdwg.mxu0
        %v1313 = vld [vmem:[%s1 + $0x68] sm:$0xf]
        %v1314 = vld [vmem:[#allocation2 + $0xc40] sm:$0xff]
        %v1315 = vld [vmem:[#allocation2 + $0xc50] sm:$0xff]
        %v1316 = vld [vmem:[#allocation2 + $0xc60] sm:$0xff]
        %v1317 = vld [vmem:[#allocation2 + $0xc70] sm:$0xff]
        %v1319 = vsel %vm616, %v1313, 0
        %1321 = vmatpush.msra.mxu0 0.0
        %1322 = vmatpush.msra.mxu0 0.0
        %1323 = vmatpush.msra.mxu0 0.0
        %1324 = vmatpush.msra.mxu0 0.0
        %1325 = vmatpush.msra.mxu0 0.0
        %1326 = vmatpush.msra.mxu0 0.0
        %1327 = vmatpush.msra.mxu0 0.0
        %1328 = vmatpush.msra.mxu0 0.0
        %1329 = vmatpush.msra.mxu0 0.0
        %1330 = vmatpush.msra.mxu0 0.0
        %1331 = vmatpush.msra.mxu0 0.0
        %1332 = vmatpush.msra.mxu0 0.0
        %1333 = vmatpush.msra.mxu0 0.0
        %1334 = vmatpush.msra.mxu0 0.0
        %1335 = vmatpush.msra.mxu0 0.0
        %1336 = vmatpush.msra.mxu0 %v1284
        %1337 = vmatmul.f32.gmra.mxu0 %v1319
        %v1338 = vpop.f32.mrf.mxu0
        %v1339 = vadd.f32 0.0, %v1338
        %1340 = vdwg.mxu0
        %vm1341 = vcmask 261120
        %v1343 = vsel %vm1341, %v1339, 0
        %1345 = vmatpush.msra.mxu0 0.0
        %1346 = vmatpush.msra.mxu0 0.0
        %1347 = vmatpush.msra.mxu0 0.0
        %1348 = vmatpush.msra.mxu0 0.0
        %1349 = vmatpush.msra.mxu0 0.0
        %1350 = vmatpush.msra.mxu0 0.0
        %1351 = vmatpush.msra.mxu0 0.0
        %1352 = vmatpush.msra.mxu0 0.0
        %1353 = vmatpush.msra.mxu0 0.0
        %1354 = vmatpush.msra.mxu0 0.0
        %1355 = vmatpush.msra.mxu0 0.0
        %1356 = vmatpush.msra.mxu0 0.0
        %1357 = vmatpush.msra.mxu0 %v1317
        %1358 = vmatpush.msra.mxu0 %v1316
        %1359 = vmatpush.msra.mxu0 %v1315
        %1360 = vmatpush.msra.mxu0 %v1314
        %1361 = vmatmul.f32.gmra.mxu0 %v1343
        %v1362 = vpop.f32.mrf.mxu0
        %v1363 = vadd.f32 0.0, %v1362
        %1364 = vdwg.mxu0
        %v1366 = vsel %vm1341, %v1311, 0
        %1368 = vmatpush.msra.mxu0 0.0
        %1369 = vmatpush.msra.mxu0 0.0
        %1370 = vmatpush.msra.mxu0 0.0
        %1371 = vmatpush.msra.mxu0 0.0
        %1372 = vmatpush.msra.mxu0 0.0
        %1373 = vmatpush.msra.mxu0 0.0
        %1374 = vmatpush.msra.mxu0 0.0
        %1375 = vmatpush.msra.mxu0 0.0
        %1376 = vmatpush.msra.mxu0 0.0
        %1377 = vmatpush.msra.mxu0 0.0
        %1378 = vmatpush.msra.mxu0 0.0
        %1379 = vmatpush.msra.mxu0 0.0
        %1380 = vmatpush.msra.mxu0 %v1289
        %1381 = vmatpush.msra.mxu0 %v1288
        %1382 = vmatpush.msra.mxu0 %v1287
        %1383 = vmatpush.msra.mxu0 %v1286
        %1384 = vmatmul.f32.gmra.mxu0 %v1366
        %v1385 = vpop.f32.mrf.mxu0
        %v1386 = vadd.f32 %v1363, %v1385
        %1387 = vdwg.mxu0
        %v1388 = vld [vmem:[%s1 + $0x70] sm:$0xf]
        %v1389 = vld [vmem:[#allocation2 + $0xc80] sm:$0xff]
        %v1390 = vld [vmem:[#allocation2 + $0xc90] sm:$0xff]
        %v1391 = vld [vmem:[#allocation2 + $0xca0] sm:$0xff]
        %v1392 = vld [vmem:[#allocation2 + $0xcb0] sm:$0xff]
        %v1394 = vsel %vm616, %v1388, 0
        %1396 = vmatpush.msra.mxu0 0.0
        %1397 = vmatpush.msra.mxu0 0.0
        %1398 = vmatpush.msra.mxu0 0.0
        %1399 = vmatpush.msra.mxu0 0.0
        %1400 = vmatpush.msra.mxu0 0.0
        %1401 = vmatpush.msra.mxu0 0.0
        %1402 = vmatpush.msra.mxu0 0.0
        %1403 = vmatpush.msra.mxu0 0.0
        %1404 = vmatpush.msra.mxu0 0.0
        %1405 = vmatpush.msra.mxu0 0.0
        %1406 = vmatpush.msra.mxu0 0.0
        %1407 = vmatpush.msra.mxu0 0.0
        %1408 = vmatpush.msra.mxu0 0.0
        %1409 = vmatpush.msra.mxu0 0.0
        %1410 = vmatpush.msra.mxu0 0.0
        %1411 = vmatpush.msra.mxu0 %v1284
        %1412 = vmatmul.f32.gmra.mxu0 %v1394
        %v1413 = vpop.f32.mrf.mxu0
        %v1414 = vadd.f32 0.0, %v1413
        %1415 = vdwg.mxu0
        %v1417 = vsel %vm1341, %v1414, 0
        %1419 = vmatpush.msra.mxu0 0.0
        %1420 = vmatpush.msra.mxu0 0.0
        %1421 = vmatpush.msra.mxu0 0.0
        %1422 = vmatpush.msra.mxu0 0.0
        %1423 = vmatpush.msra.mxu0 0.0
        %1424 = vmatpush.msra.mxu0 0.0
        %1425 = vmatpush.msra.mxu0 0.0
        %1426 = vmatpush.msra.mxu0 0.0
        %1427 = vmatpush.msra.mxu0 0.0
        %1428 = vmatpush.msra.mxu0 0.0
        %1429 = vmatpush.msra.mxu0 0.0
        %1430 = vmatpush.msra.mxu0 0.0
        %1431 = vmatpush.msra.mxu0 %v1392
        %1432 = vmatpush.msra.mxu0 %v1391
        %1433 = vmatpush.msra.mxu0 %v1390
        %1434 = vmatpush.msra.mxu0 %v1389
        %1435 = vmatmul.f32.gmra.mxu0 %v1417
        %v1436 = vpop.f32.mrf.mxu0
        %v1437 = vadd.f32 0.0, %v1436
        %1438 = vdwg.mxu0
        %v1439 = vadd.f32 %v1386, %v1437
        %v1440 = vld [vmem:[%s1 + $0x78] sm:$0xf]
        %v1441 = vld [vmem:[#allocation2 + $0xcc0] sm:$0xff]
        %v1442 = vld [vmem:[#allocation2 + $0xcd0] sm:$0xff]
        %v1443 = vld [vmem:[#allocation2 + $0xce0] sm:$0xff]
        %v1444 = vld [vmem:[#allocation2 + $0xcf0] sm:$0xff]
        %v1446 = vsel %vm616, %v1440, 0
        %1448 = vmatpush.msra.mxu0 0.0
        %1449 = vmatpush.msra.mxu0 0.0
        %1450 = vmatpush.msra.mxu0 0.0
        %1451 = vmatpush.msra.mxu0 0.0
        %1452 = vmatpush.msra.mxu0 0.0
        %1453 = vmatpush.msra.mxu0 0.0
        %1454 = vmatpush.msra.mxu0 0.0
        %1455 = vmatpush.msra.mxu0 0.0
        %1456 = vmatpush.msra.mxu0 0.0
        %1457 = vmatpush.msra.mxu0 0.0
        %1458 = vmatpush.msra.mxu0 0.0
        %1459 = vmatpush.msra.mxu0 0.0
        %1460 = vmatpush.msra.mxu0 0.0
        %1461 = vmatpush.msra.mxu0 0.0
        %1462 = vmatpush.msra.mxu0 0.0
        %1463 = vmatpush.msra.mxu0 %v1284
        %1464 = vmatmul.f32.gmra.mxu0 %v1446
        %v1465 = vpop.f32.mrf.mxu0
        %v1466 = vadd.f32 0.0, %v1465
        %1467 = vdwg.mxu0
        %v1469 = vsel %vm1341, %v1466, 0
        %1471 = vmatpush.msra.mxu0 0.0
        %1472 = vmatpush.msra.mxu0 0.0
        %1473 = vmatpush.msra.mxu0 0.0
        %1474 = vmatpush.msra.mxu0 0.0
        %1475 = vmatpush.msra.mxu0 0.0
        %1476 = vmatpush.msra.mxu0 0.0
        %1477 = vmatpush.msra.mxu0 0.0
        %1478 = vmatpush.msra.mxu0 0.0
        %1479 = vmatpush.msra.mxu0 0.0
        %1480 = vmatpush.msra.mxu0 0.0
        %1481 = vmatpush.msra.mxu0 0.0
        %1482 = vmatpush.msra.mxu0 0.0
        %1483 = vmatpush.msra.mxu0 %v1444
        %1484 = vmatpush.msra.mxu0 %v1443
        %1485 = vmatpush.msra.mxu0 %v1442
        %1486 = vmatpush.msra.mxu0 %v1441
        %1487 = vmatmul.f32.gmra.mxu0 %v1469
        %v1488 = vpop.f32.mrf.mxu0
        %v1489 = vadd.f32 0.0, %v1488
        %1490 = vdwg.mxu0
        %v1491 = vadd.f32 %v1439, %v1489
        %v1492 = vld [vmem:[#allocation4 + $0x30] sm:$0xf]
        %v1493 = vadd.f32 %v1491, %v1492
        %v1494 = vmul.f32 %v1493, 0.01
        %v1495 = vmax.f32 %v1493, %v1494
        %v1496 = vld [vmem:[%s1 + $0x80] sm:$0xff]
        %v1497 = vld [vmem:[#allocation2 + $0xd00] sm:$0xff]
        %v1498 = vld [vmem:[#allocation2 + $0xd08] sm:$0xff]
        %v1499 = vld [vmem:[#allocation2 + $0xd10] sm:$0xff]
        %v1500 = vld [vmem:[#allocation2 + $0xd18] sm:$0xff]
        %v1501 = vld [vmem:[#allocation2 + $0xd20] sm:$0xff]
        %v1502 = vld [vmem:[#allocation2 + $0xd28] sm:$0xff]
        %v1503 = vld [vmem:[#allocation2 + $0xd30] sm:$0xff]
        %v1504 = vld [vmem:[#allocation2 + $0xd38] sm:$0xff]
        %v1505 = vld [vmem:[#allocation2 + $0xd40] sm:$0xff]
        %v1506 = vld [vmem:[#allocation2 + $0xd48] sm:$0xff]
        %v1507 = vld [vmem:[#allocation2 + $0xd50] sm:$0xff]
        %v1508 = vld [vmem:[#allocation2 + $0xd58] sm:$0xff]
        %v1509 = vld [vmem:[#allocation2 + $0xd60] sm:$0xff]
        %v1510 = vld [vmem:[#allocation2 + $0xd68] sm:$0xff]
        %v1511 = vld [vmem:[#allocation2 + $0xd70] sm:$0xff]
        %v1512 = vld [vmem:[#allocation2 + $0xd78] sm:$0xff]
        %v1514 = vsel %vm1063, %v1496, 0
        %v1517 = vsel %vm1067, %v1495, 0
        %1519 = vmatpush.msra.mxu0 0.0
        %1520 = vmatpush.msra.mxu0 0.0
        %1521 = vmatpush.msra.mxu0 0.0
        %1522 = vmatpush.msra.mxu0 0.0
        %1523 = vmatpush.msra.mxu0 0.0
        %1524 = vmatpush.msra.mxu0 0.0
        %1525 = vmatpush.msra.mxu0 0.0
        %1526 = vmatpush.msra.mxu0 0.0
        %1527 = vmatpush.msra.mxu0 0.0
        %1528 = vmatpush.msra.mxu0 0.0
        %1529 = vmatpush.msra.mxu0 0.0
        %1530 = vmatpush.msra.mxu0 0.0
        %1531 = vmatpush.msra.mxu0 0.0
        %1532 = vmatpush.msra.mxu0 0.0
        %1533 = vmatpush.msra.mxu0 0.0
        %1534 = vmatpush.msra.mxu0 %v1517
        %1535 = vmatmul.f32.gmra.mxu0 %v1514
        %v1536 = vpop.f32.mrf.mxu0
        %v1537 = vadd.f32 0.0, %v1536
        %1538 = vdwg.mxu0
        %v1539 = vld [vmem:[%s1 + $0x88] sm:$0xff]
        %v1540 = vld [vmem:[#allocation2 + $0xd80] sm:$0xff]
        %v1541 = vld [vmem:[#allocation2 + $0xd88] sm:$0xff]
        %v1542 = vld [vmem:[#allocation2 + $0xd90] sm:$0xff]
        %v1543 = vld [vmem:[#allocation2 + $0xd98] sm:$0xff]
        %v1544 = vld [vmem:[#allocation2 + $0xda0] sm:$0xff]
        %v1545 = vld [vmem:[#allocation2 + $0xda8] sm:$0xff]
        %v1546 = vld [vmem:[#allocation2 + $0xdb0] sm:$0xff]
        %v1547 = vld [vmem:[#allocation2 + $0xdb8] sm:$0xff]
        %v1548 = vld [vmem:[#allocation2 + $0xdc0] sm:$0xff]
        %v1549 = vld [vmem:[#allocation2 + $0xdc8] sm:$0xff]
        %v1550 = vld [vmem:[#allocation2 + $0xdd0] sm:$0xff]
        %v1551 = vld [vmem:[#allocation2 + $0xdd8] sm:$0xff]
        %v1552 = vld [vmem:[#allocation2 + $0xde0] sm:$0xff]
        %v1553 = vld [vmem:[#allocation2 + $0xde8] sm:$0xff]
        %v1554 = vld [vmem:[#allocation2 + $0xdf0] sm:$0xff]
        %v1555 = vld [vmem:[#allocation2 + $0xdf8] sm:$0xff]
        %v1557 = vsel %vm1063, %v1539, 0
        %1559 = vmatpush.msra.mxu0 0.0
        %1560 = vmatpush.msra.mxu0 0.0
        %1561 = vmatpush.msra.mxu0 0.0
        %1562 = vmatpush.msra.mxu0 0.0
        %1563 = vmatpush.msra.mxu0 0.0
        %1564 = vmatpush.msra.mxu0 0.0
        %1565 = vmatpush.msra.mxu0 0.0
        %1566 = vmatpush.msra.mxu0 0.0
        %1567 = vmatpush.msra.mxu0 0.0
        %1568 = vmatpush.msra.mxu0 0.0
        %1569 = vmatpush.msra.mxu0 0.0
        %1570 = vmatpush.msra.mxu0 0.0
        %1571 = vmatpush.msra.mxu0 0.0
        %1572 = vmatpush.msra.mxu0 0.0
        %1573 = vmatpush.msra.mxu0 0.0
        %1574 = vmatpush.msra.mxu0 %v1517
        %1575 = vmatmul.f32.gmra.mxu0 %v1557
        %v1576 = vpop.f32.mrf.mxu0
        %v1577 = vadd.f32 0.0, %v1576
        %1578 = vdwg.mxu0
        %v1580 = vsel %vm318, %v1577, 0
        %1582 = vmatpush.msra.mxu0 0.0
        %1583 = vmatpush.msra.mxu0 0.0
        %1584 = vmatpush.msra.mxu0 0.0
        %1585 = vmatpush.msra.mxu0 0.0
        %1586 = vmatpush.msra.mxu0 0.0
        %1587 = vmatpush.msra.mxu0 0.0
        %1588 = vmatpush.msra.mxu0 0.0
        %1589 = vmatpush.msra.mxu0 0.0
        %1590 = vmatpush.msra.mxu0 %v1554
        %1591 = vmatpush.msra.mxu0 %v1552
        %1592 = vmatpush.msra.mxu0 %v1550
        %1593 = vmatpush.msra.mxu0 %v1548
        %1594 = vmatpush.msra.mxu0 %v1546
        %1595 = vmatpush.msra.mxu0 %v1544
        %1596 = vmatpush.msra.mxu0 %v1542
        %1597 = vmatpush.msra.mxu0 %v1540
        %1598 = vmatmul.f32.gmra.mxu0 %v1580
        %v1599 = vpop.f32.mrf.mxu0
        %v1600 = vadd.f32 0.0, %v1599
        %1601 = vdwg.mxu0
        %1602 = vmatpush.msra.mxu0 0.0
        %1603 = vmatpush.msra.mxu0 0.0
        %1604 = vmatpush.msra.mxu0 0.0
        %1605 = vmatpush.msra.mxu0 0.0
        %1606 = vmatpush.msra.mxu0 0.0
        %1607 = vmatpush.msra.mxu0 0.0
        %1608 = vmatpush.msra.mxu0 0.0
        %1609 = vmatpush.msra.mxu0 0.0
        %1610 = vmatpush.msra.mxu0 %v1555
        %1611 = vmatpush.msra.mxu0 %v1553
        %1612 = vmatpush.msra.mxu0 %v1551
        %1613 = vmatpush.msra.mxu0 %v1549
        %1614 = vmatpush.msra.mxu0 %v1547
        %1615 = vmatpush.msra.mxu0 %v1545
        %1616 = vmatpush.msra.mxu0 %v1543
        %1617 = vmatpush.msra.mxu0 %v1541
        %1618 = vmatmul.f32.gmra.mxu0 %v1580
        %v1619 = vpop.f32.mrf.mxu0
        %v1620 = vadd.f32 0.0, %v1619
        %1621 = vdwg.mxu0
        %v1623 = vsel %vm318, %v1537, 0
        %1625 = vmatpush.msra.mxu0 0.0
        %1626 = vmatpush.msra.mxu0 0.0
        %1627 = vmatpush.msra.mxu0 0.0
        %1628 = vmatpush.msra.mxu0 0.0
        %1629 = vmatpush.msra.mxu0 0.0
        %1630 = vmatpush.msra.mxu0 0.0
        %1631 = vmatpush.msra.mxu0 0.0
        %1632 = vmatpush.msra.mxu0 0.0
        %1633 = vmatpush.msra.mxu0 %v1511
        %1634 = vmatpush.msra.mxu0 %v1509
        %1635 = vmatpush.msra.mxu0 %v1507
        %1636 = vmatpush.msra.mxu0 %v1505
        %1637 = vmatpush.msra.mxu0 %v1503
        %1638 = vmatpush.msra.mxu0 %v1501
        %1639 = vmatpush.msra.mxu0 %v1499
        %1640 = vmatpush.msra.mxu0 %v1497
        %1641 = vmatmul.f32.gmra.mxu0 %v1623
        %v1642 = vpop.f32.mrf.mxu0
        %v1643 = vadd.f32 %v1600, %v1642
        %1644 = vdwg.mxu0
        %1645 = vmatpush.msra.mxu0 0.0
        %1646 = vmatpush.msra.mxu0 0.0
        %1647 = vmatpush.msra.mxu0 0.0
        %1648 = vmatpush.msra.mxu0 0.0
        %1649 = vmatpush.msra.mxu0 0.0
        %1650 = vmatpush.msra.mxu0 0.0
        %1651 = vmatpush.msra.mxu0 0.0
        %1652 = vmatpush.msra.mxu0 0.0
        %1653 = vmatpush.msra.mxu0 %v1512
        %1654 = vmatpush.msra.mxu0 %v1510
        %1655 = vmatpush.msra.mxu0 %v1508
        %1656 = vmatpush.msra.mxu0 %v1506
        %1657 = vmatpush.msra.mxu0 %v1504
        %1658 = vmatpush.msra.mxu0 %v1502
        %1659 = vmatpush.msra.mxu0 %v1500
        %1660 = vmatpush.msra.mxu0 %v1498
        %1661 = vmatmul.f32.gmra.mxu0 %v1623
        %v1662 = vpop.f32.mrf.mxu0
        %v1663 = vadd.f32 %v1620, %v1662
        %1664 = vdwg.mxu0
        %v1665 = vld [vmem:[%s1 + $0x90] sm:$0xff]
        %v1666 = vld [vmem:[#allocation2 + $0xe00] sm:$0xff]
        %v1667 = vld [vmem:[#allocation2 + $0xe08] sm:$0xff]
        %v1668 = vld [vmem:[#allocation2 + $0xe10] sm:$0xff]
        %v1669 = vld [vmem:[#allocation2 + $0xe18] sm:$0xff]
        %v1670 = vld [vmem:[#allocation2 + $0xe20] sm:$0xff]
        %v1671 = vld [vmem:[#allocation2 + $0xe28] sm:$0xff]
        %v1672 = vld [vmem:[#allocation2 + $0xe30] sm:$0xff]
        %v1673 = vld [vmem:[#allocation2 + $0xe38] sm:$0xff]
        %v1674 = vld [vmem:[#allocation2 + $0xe40] sm:$0xff]
        %v1675 = vld [vmem:[#allocation2 + $0xe48] sm:$0xff]
        %v1676 = vld [vmem:[#allocation2 + $0xe50] sm:$0xff]
        %v1677 = vld [vmem:[#allocation2 + $0xe58] sm:$0xff]
        %v1678 = vld [vmem:[#allocation2 + $0xe60] sm:$0xff]
        %v1679 = vld [vmem:[#allocation2 + $0xe68] sm:$0xff]
        %v1680 = vld [vmem:[#allocation2 + $0xe70] sm:$0xff]
        %v1681 = vld [vmem:[#allocation2 + $0xe78] sm:$0xff]
        %v1683 = vsel %vm1063, %v1665, 0
        %1685 = vmatpush.msra.mxu0 0.0
        %1686 = vmatpush.msra.mxu0 0.0
        %1687 = vmatpush.msra.mxu0 0.0
        %1688 = vmatpush.msra.mxu0 0.0
        %1689 = vmatpush.msra.mxu0 0.0
        %1690 = vmatpush.msra.mxu0 0.0
        %1691 = vmatpush.msra.mxu0 0.0
        %1692 = vmatpush.msra.mxu0 0.0
        %1693 = vmatpush.msra.mxu0 0.0
        %1694 = vmatpush.msra.mxu0 0.0
        %1695 = vmatpush.msra.mxu0 0.0
        %1696 = vmatpush.msra.mxu0 0.0
        %1697 = vmatpush.msra.mxu0 0.0
        %1698 = vmatpush.msra.mxu0 0.0
        %1699 = vmatpush.msra.mxu0 0.0
        %1700 = vmatpush.msra.mxu0 %v1517
        %1701 = vmatmul.f32.gmra.mxu0 %v1683
        %v1702 = vpop.f32.mrf.mxu0
        %v1703 = vadd.f32 0.0, %v1702
        %1704 = vdwg.mxu0
        %v1706 = vsel %vm318, %v1703, 0
        %1708 = vmatpush.msra.mxu0 0.0
        %1709 = vmatpush.msra.mxu0 0.0
        %1710 = vmatpush.msra.mxu0 0.0
        %1711 = vmatpush.msra.mxu0 0.0
        %1712 = vmatpush.msra.mxu0 0.0
        %1713 = vmatpush.msra.mxu0 0.0
        %1714 = vmatpush.msra.mxu0 0.0
        %1715 = vmatpush.msra.mxu0 0.0
        %1716 = vmatpush.msra.mxu0 %v1680
        %1717 = vmatpush.msra.mxu0 %v1678
        %1718 = vmatpush.msra.mxu0 %v1676
        %1719 = vmatpush.msra.mxu0 %v1674
        %1720 = vmatpush.msra.mxu0 %v1672
        %1721 = vmatpush.msra.mxu0 %v1670
        %1722 = vmatpush.msra.mxu0 %v1668
        %1723 = vmatpush.msra.mxu0 %v1666
        %1724 = vmatmul.f32.gmra.mxu0 %v1706
        %v1725 = vpop.f32.mrf.mxu0
        %v1726 = vadd.f32 0.0, %v1725
        %1727 = vdwg.mxu0
        %1728 = vmatpush.msra.mxu0 0.0
        %1729 = vmatpush.msra.mxu0 0.0
        %1730 = vmatpush.msra.mxu0 0.0
        %1731 = vmatpush.msra.mxu0 0.0
        %1732 = vmatpush.msra.mxu0 0.0
        %1733 = vmatpush.msra.mxu0 0.0
        %1734 = vmatpush.msra.mxu0 0.0
        %1735 = vmatpush.msra.mxu0 0.0
        %1736 = vmatpush.msra.mxu0 %v1681
        %1737 = vmatpush.msra.mxu0 %v1679
        %1738 = vmatpush.msra.mxu0 %v1677
        %1739 = vmatpush.msra.mxu0 %v1675
        %1740 = vmatpush.msra.mxu0 %v1673
        %1741 = vmatpush.msra.mxu0 %v1671
        %1742 = vmatpush.msra.mxu0 %v1669
        %1743 = vmatpush.msra.mxu0 %v1667
        %1744 = vmatmul.f32.gmra.mxu0 %v1706
        %v1745 = vpop.f32.mrf.mxu0
        %v1746 = vadd.f32 0.0, %v1745
        %1747 = vdwg.mxu0
        %v1748 = vadd.f32 %v1643, %v1726
        %v1749 = vadd.f32 %v1663, %v1746
        %v1750 = vld [vmem:[%s1 + $0x98] sm:$0xff]
        %v1751 = vld [vmem:[#allocation2 + $0xe80] sm:$0xff]
        %v1752 = vld [vmem:[#allocation2 + $0xe88] sm:$0xff]
        %v1753 = vld [vmem:[#allocation2 + $0xe90] sm:$0xff]
        %v1754 = vld [vmem:[#allocation2 + $0xe98] sm:$0xff]
        %v1755 = vld [vmem:[#allocation2 + $0xea0] sm:$0xff]
        %v1756 = vld [vmem:[#allocation2 + $0xea8] sm:$0xff]
        %v1757 = vld [vmem:[#allocation2 + $0xeb0] sm:$0xff]
        %v1758 = vld [vmem:[#allocation2 + $0xeb8] sm:$0xff]
        %v1759 = vld [vmem:[#allocation2 + $0xec0] sm:$0xff]
        %v1760 = vld [vmem:[#allocation2 + $0xec8] sm:$0xff]
        %v1761 = vld [vmem:[#allocation2 + $0xed0] sm:$0xff]
        %v1762 = vld [vmem:[#allocation2 + $0xed8] sm:$0xff]
        %v1763 = vld [vmem:[#allocation2 + $0xee0] sm:$0xff]
        %v1764 = vld [vmem:[#allocation2 + $0xee8] sm:$0xff]
        %v1765 = vld [vmem:[#allocation2 + $0xef0] sm:$0xff]
        %v1766 = vld [vmem:[#allocation2 + $0xef8] sm:$0xff]
        %v1768 = vsel %vm1063, %v1750, 0
        %1770 = vmatpush.msra.mxu0 0.0
        %1771 = vmatpush.msra.mxu0 0.0
        %1772 = vmatpush.msra.mxu0 0.0
        %1773 = vmatpush.msra.mxu0 0.0
        %1774 = vmatpush.msra.mxu0 0.0
        %1775 = vmatpush.msra.mxu0 0.0
        %1776 = vmatpush.msra.mxu0 0.0
        %1777 = vmatpush.msra.mxu0 0.0
        %1778 = vmatpush.msra.mxu0 0.0
        %1779 = vmatpush.msra.mxu0 0.0
        %1780 = vmatpush.msra.mxu0 0.0
        %1781 = vmatpush.msra.mxu0 0.0
        %1782 = vmatpush.msra.mxu0 0.0
        %1783 = vmatpush.msra.mxu0 0.0
        %1784 = vmatpush.msra.mxu0 0.0
        %1785 = vmatpush.msra.mxu0 %v1517
        %1786 = vmatmul.f32.gmra.mxu0 %v1768
        %v1787 = vpop.f32.mrf.mxu0
        %v1788 = vadd.f32 0.0, %v1787
        %1789 = vdwg.mxu0
        %v1791 = vsel %vm318, %v1788, 0
        %1793 = vmatpush.msra.mxu0 0.0
        %1794 = vmatpush.msra.mxu0 0.0
        %1795 = vmatpush.msra.mxu0 0.0
        %1796 = vmatpush.msra.mxu0 0.0
        %1797 = vmatpush.msra.mxu0 0.0
        %1798 = vmatpush.msra.mxu0 0.0
        %1799 = vmatpush.msra.mxu0 0.0
        %1800 = vmatpush.msra.mxu0 0.0
        %1801 = vmatpush.msra.mxu0 %v1765
        %1802 = vmatpush.msra.mxu0 %v1763
        %1803 = vmatpush.msra.mxu0 %v1761
        %1804 = vmatpush.msra.mxu0 %v1759
        %1805 = vmatpush.msra.mxu0 %v1757
        %1806 = vmatpush.msra.mxu0 %v1755
        %1807 = vmatpush.msra.mxu0 %v1753
        %1808 = vmatpush.msra.mxu0 %v1751
        %1809 = vmatmul.f32.gmra.mxu0 %v1791
        %v1810 = vpop.f32.mrf.mxu0
        %v1811 = vadd.f32 0.0, %v1810
        %1812 = vdwg.mxu0
        %1813 = vmatpush.msra.mxu0 0.0
        %1814 = vmatpush.msra.mxu0 0.0
        %1815 = vmatpush.msra.mxu0 0.0
        %1816 = vmatpush.msra.mxu0 0.0
        %1817 = vmatpush.msra.mxu0 0.0
        %1818 = vmatpush.msra.mxu0 0.0
        %1819 = vmatpush.msra.mxu0 0.0
        %1820 = vmatpush.msra.mxu0 0.0
        %1821 = vmatpush.msra.mxu0 %v1766
        %1822 = vmatpush.msra.mxu0 %v1764
        %1823 = vmatpush.msra.mxu0 %v1762
        %1824 = vmatpush.msra.mxu0 %v1760
        %1825 = vmatpush.msra.mxu0 %v1758
        %1826 = vmatpush.msra.mxu0 %v1756
        %1827 = vmatpush.msra.mxu0 %v1754
        %1828 = vmatpush.msra.mxu0 %v1752
        %1829 = vmatmul.f32.gmra.mxu0 %v1791
        %v1830 = vpop.f32.mrf.mxu0
        %v1831 = vadd.f32 0.0, %v1830
        %1832 = vdwg.mxu0
        %v1833 = vadd.f32 %v1748, %v1811
        %v1834 = vadd.f32 %v1749, %v1831
        %v1835 = vld [vmem:[#allocation4 + $0x40] sm:$0xff]
        %v1836 = vld [vmem:[#allocation4 + $0x48] sm:$0xff]
        %v1837 = vadd.f32 %v1833, %v1835
        %v1838 = vadd.f32 %v1834, %v1836
        %v1839 = vmul.f32 %v1837, 0.01
        %v1840 = vmul.f32 %v1838, 0.01
        %v1841 = vmax.f32 %v1837, %v1839
        %v1842 = vmax.f32 %v1838, %v1840
        %v1843 = vld [vmem:[%s1 + $0xa0] sm:$0xff]
        %v1844 = vld [vmem:[%s1 + $0xa8] sm:$0xff]
        %v1845 = vld [vmem:[#allocation2 + $0xf00] sm:$0xff]
        %v1846 = vld [vmem:[#allocation2 + $0xf10] sm:$0xff]
        %v1847 = vld [vmem:[#allocation2 + $0xf20] sm:$0xff]
        %v1848 = vld [vmem:[#allocation2 + $0xf30] sm:$0xff]
        %v1849 = vld [vmem:[#allocation2 + $0xf40] sm:$0xff]
        %v1850 = vld [vmem:[#allocation2 + $0xf50] sm:$0xff]
        %v1851 = vld [vmem:[#allocation2 + $0xf60] sm:$0xff]
        %v1852 = vld [vmem:[#allocation2 + $0xf70] sm:$0xff]
        %v1853 = vld [vmem:[#allocation2 + $0xf80] sm:$0xff]
        %v1854 = vld [vmem:[#allocation2 + $0xf90] sm:$0xff]
        %v1855 = vld [vmem:[#allocation2 + $0xfa0] sm:$0xff]
        %v1856 = vld [vmem:[#allocation2 + $0xfb0] sm:$0xff]
        %v1857 = vld [vmem:[#allocation2 + $0xfc0] sm:$0xff]
        %v1858 = vld [vmem:[#allocation2 + $0xfd0] sm:$0xff]
        %v1859 = vld [vmem:[#allocation2 + $0xfe0] sm:$0xff]
        %v1860 = vld [vmem:[#allocation2 + $0xff0] sm:$0xff]
        %v1861 = vld [vmem:[#allocation2 + $0x1000] sm:$0xff]
        %v1862 = vld [vmem:[#allocation2 + $0x1010] sm:$0xff]
        %v1863 = vld [vmem:[#allocation2 + $0x1020] sm:$0xff]
        %v1864 = vld [vmem:[#allocation2 + $0x1030] sm:$0xff]
        %v1865 = vld [vmem:[#allocation2 + $0x1040] sm:$0xff]
        %v1866 = vld [vmem:[#allocation2 + $0x1050] sm:$0xff]
        %v1867 = vld [vmem:[#allocation2 + $0x1060] sm:$0xff]
        %v1868 = vld [vmem:[#allocation2 + $0x1070] sm:$0xff]
        %v1869 = vld [vmem:[#allocation2 + $0x1080] sm:$0xff]
        %v1870 = vld [vmem:[#allocation2 + $0x1090] sm:$0xff]
        %v1871 = vld [vmem:[#allocation2 + $0x10a0] sm:$0xff]
        %v1872 = vld [vmem:[#allocation2 + $0x10b0] sm:$0xff]
        %v1873 = vld [vmem:[#allocation2 + $0x10c0] sm:$0xff]
        %v1874 = vld [vmem:[#allocation2 + $0x10d0] sm:$0xff]
        %v1875 = vld [vmem:[#allocation2 + $0x10e0] sm:$0xff]
        %v1876 = vld [vmem:[#allocation2 + $0x10f0] sm:$0xff]
        %v1878 = vsel %vm616, %v1843, 0
        %v1881 = vsel %vm616, %v1844, 0
        %1883 = vmatpush.msra.mxu0 0.0
        %1884 = vmatpush.msra.mxu0 0.0
        %1885 = vmatpush.msra.mxu0 0.0
        %1886 = vmatpush.msra.mxu0 0.0
        %1887 = vmatpush.msra.mxu0 0.0
        %1888 = vmatpush.msra.mxu0 0.0
        %1889 = vmatpush.msra.mxu0 0.0
        %1890 = vmatpush.msra.mxu0 0.0
        %1891 = vmatpush.msra.mxu0 0.0
        %1892 = vmatpush.msra.mxu0 0.0
        %1893 = vmatpush.msra.mxu0 0.0
        %1894 = vmatpush.msra.mxu0 0.0
        %1895 = vmatpush.msra.mxu0 0.0
        %1896 = vmatpush.msra.mxu0 0.0
        %1897 = vmatpush.msra.mxu0 0.0
        %1898 = vmatpush.msra.mxu0 %v1841
        %1899 = vmatmul.f32.gmra.mxu0 %v1878
        %v1900 = vpop.f32.mrf.mxu0
        %v1901 = vadd.f32 0.0, %v1900
        %1902 = vmatmul.f32.gmra.mxu0 %v1881
        %v1903 = vpop.f32.mrf.mxu0
        %v1904 = vadd.f32 0.0, %v1903
        %1905 = vdwg.mxu0
        %1906 = vmatpush.msra.mxu0 0.0
        %1907 = vmatpush.msra.mxu0 0.0
        %1908 = vmatpush.msra.mxu0 0.0
        %1909 = vmatpush.msra.mxu0 0.0
        %1910 = vmatpush.msra.mxu0 0.0
        %1911 = vmatpush.msra.mxu0 0.0
        %1912 = vmatpush.msra.mxu0 0.0
        %1913 = vmatpush.msra.mxu0 0.0
        %1914 = vmatpush.msra.mxu0 0.0
        %1915 = vmatpush.msra.mxu0 0.0
        %1916 = vmatpush.msra.mxu0 0.0
        %1917 = vmatpush.msra.mxu0 0.0
        %1918 = vmatpush.msra.mxu0 0.0
        %1919 = vmatpush.msra.mxu0 0.0
        %1920 = vmatpush.msra.mxu0 0.0
        %1921 = vmatpush.msra.mxu0 %v1842
        %1922 = vmatmul.f32.gmra.mxu0 %v1878
        %v1923 = vpop.f32.mrf.mxu0
        %v1924 = vadd.f32 0.0, %v1923
        %1925 = vmatmul.f32.gmra.mxu0 %v1881
        %v1926 = vpop.f32.mrf.mxu0
        %v1927 = vadd.f32 0.0, %v1926
        %1928 = vdwg.mxu0
        %v1929 = vld [vmem:[%s1 + $0xb0] sm:$0xff]
        %v1930 = vld [vmem:[%s1 + $0xb8] sm:$0xff]
        %v1931 = vld [vmem:[#allocation2 + $0x1100] sm:$0xff]
        %v1932 = vld [vmem:[#allocation2 + $0x1110] sm:$0xff]
        %v1933 = vld [vmem:[#allocation2 + $0x1120] sm:$0xff]
        %v1934 = vld [vmem:[#allocation2 + $0x1130] sm:$0xff]
        %v1935 = vld [vmem:[#allocation2 + $0x1140] sm:$0xff]
        %v1936 = vld [vmem:[#allocation2 + $0x1150] sm:$0xff]
        %v1937 = vld [vmem:[#allocation2 + $0x1160] sm:$0xff]
        %v1938 = vld [vmem:[#allocation2 + $0x1170] sm:$0xff]
        %v1939 = vld [vmem:[#allocation2 + $0x1180] sm:$0xff]
        %v1940 = vld [vmem:[#allocation2 + $0x1190] sm:$0xff]
        %v1941 = vld [vmem:[#allocation2 + $0x11a0] sm:$0xff]
        %v1942 = vld [vmem:[#allocation2 + $0x11b0] sm:$0xff]
        %v1943 = vld [vmem:[#allocation2 + $0x11c0] sm:$0xff]
        %v1944 = vld [vmem:[#allocation2 + $0x11d0] sm:$0xff]
        %v1945 = vld [vmem:[#allocation2 + $0x11e0] sm:$0xff]
        %v1946 = vld [vmem:[#allocation2 + $0x11f0] sm:$0xff]
        %v1947 = vld [vmem:[#allocation2 + $0x1200] sm:$0xff]
        %v1948 = vld [vmem:[#allocation2 + $0x1210] sm:$0xff]
        %v1949 = vld [vmem:[#allocation2 + $0x1220] sm:$0xff]
        %v1950 = vld [vmem:[#allocation2 + $0x1230] sm:$0xff]
        %v1951 = vld [vmem:[#allocation2 + $0x1240] sm:$0xff]
        %v1952 = vld [vmem:[#allocation2 + $0x1250] sm:$0xff]
        %v1953 = vld [vmem:[#allocation2 + $0x1260] sm:$0xff]
        %v1954 = vld [vmem:[#allocation2 + $0x1270] sm:$0xff]
        %v1955 = vld [vmem:[#allocation2 + $0x1280] sm:$0xff]
        %v1956 = vld [vmem:[#allocation2 + $0x1290] sm:$0xff]
        %v1957 = vld [vmem:[#allocation2 + $0x12a0] sm:$0xff]
        %v1958 = vld [vmem:[#allocation2 + $0x12b0] sm:$0xff]
        %v1959 = vld [vmem:[#allocation2 + $0x12c0] sm:$0xff]
        %v1960 = vld [vmem:[#allocation2 + $0x12d0] sm:$0xff]
        %v1961 = vld [vmem:[#allocation2 + $0x12e0] sm:$0xff]
        %v1962 = vld [vmem:[#allocation2 + $0x12f0] sm:$0xff]
        %v1964 = vsel %vm616, %v1929, 0
        %v1967 = vsel %vm616, %v1930, 0
        %1969 = vmatpush.msra.mxu0 0.0
        %1970 = vmatpush.msra.mxu0 0.0
        %1971 = vmatpush.msra.mxu0 0.0
        %1972 = vmatpush.msra.mxu0 0.0
        %1973 = vmatpush.msra.mxu0 0.0
        %1974 = vmatpush.msra.mxu0 0.0
        %1975 = vmatpush.msra.mxu0 0.0
        %1976 = vmatpush.msra.mxu0 0.0
        %1977 = vmatpush.msra.mxu0 0.0
        %1978 = vmatpush.msra.mxu0 0.0
        %1979 = vmatpush.msra.mxu0 0.0
        %1980 = vmatpush.msra.mxu0 0.0
        %1981 = vmatpush.msra.mxu0 0.0
        %1982 = vmatpush.msra.mxu0 0.0
        %1983 = vmatpush.msra.mxu0 0.0
        %1984 = vmatpush.msra.mxu0 %v1841
        %1985 = vmatmul.f32.gmra.mxu0 %v1964
        %v1986 = vpop.f32.mrf.mxu0
        %v1987 = vadd.f32 0.0, %v1986
        %1988 = vmatmul.f32.gmra.mxu0 %v1967
        %v1989 = vpop.f32.mrf.mxu0
        %v1990 = vadd.f32 0.0, %v1989
        %1991 = vdwg.mxu0
        %1992 = vmatpush.msra.mxu0 0.0
        %1993 = vmatpush.msra.mxu0 0.0
        %1994 = vmatpush.msra.mxu0 0.0
        %1995 = vmatpush.msra.mxu0 0.0
        %1996 = vmatpush.msra.mxu0 0.0
        %1997 = vmatpush.msra.mxu0 0.0
        %1998 = vmatpush.msra.mxu0 0.0
        %1999 = vmatpush.msra.mxu0 0.0
        %2000 = vmatpush.msra.mxu0 0.0
        %2001 = vmatpush.msra.mxu0 0.0
        %2002 = vmatpush.msra.mxu0 0.0
        %2003 = vmatpush.msra.mxu0 0.0
        %2004 = vmatpush.msra.mxu0 0.0
        %2005 = vmatpush.msra.mxu0 0.0
        %2006 = vmatpush.msra.mxu0 0.0
        %2007 = vmatpush.msra.mxu0 %v1842
        %2008 = vmatmul.f32.gmra.mxu0 %v1964
        %v2009 = vpop.f32.mrf.mxu0
        %v2010 = vadd.f32 0.0, %v2009
        %2011 = vmatmul.f32.gmra.mxu0 %v1967
        %v2012 = vpop.f32.mrf.mxu0
        %v2013 = vadd.f32 0.0, %v2012
        %2014 = vdwg.mxu0
        %2015 = vmatpush.msra.mxu0 %v1946
        %2016 = vmatpush.msra.mxu0 %v1945
        %2017 = vmatpush.msra.mxu0 %v1944
        %2018 = vmatpush.msra.mxu0 %v1943
        %2019 = vmatpush.msra.mxu0 %v1942
        %2020 = vmatpush.msra.mxu0 %v1941
        %2021 = vmatpush.msra.mxu0 %v1940
        %2022 = vmatpush.msra.mxu0 %v1939
        %2023 = vmatpush.msra.mxu0 %v1938
        %2024 = vmatpush.msra.mxu0 %v1937
        %2025 = vmatpush.msra.mxu0 %v1936
        %2026 = vmatpush.msra.mxu0 %v1935
        %2027 = vmatpush.msra.mxu0 %v1934
        %2028 = vmatpush.msra.mxu0 %v1933
        %2029 = vmatpush.msra.mxu0 %v1932
        %2030 = vmatpush.msra.mxu0 %v1931
        %2031 = vmatmul.f32.gmra.mxu0 %v1987
        %v2032 = vpop.f32.mrf.mxu0
        %v2033 = vadd.f32 0.0, %v2032
        %2034 = vmatmul.f32.gmra.mxu0 %v1990
        %v2035 = vpop.f32.mrf.mxu0
        %v2036 = vadd.f32 0.0, %v2035
        %2037 = vdwg.mxu0
        %2038 = vmatpush.msra.mxu0 %v1962
        %2039 = vmatpush.msra.mxu0 %v1961
        %2040 = vmatpush.msra.mxu0 %v1960
        %2041 = vmatpush.msra.mxu0 %v1959
        %2042 = vmatpush.msra.mxu0 %v1958
        %2043 = vmatpush.msra.mxu0 %v1957
        %2044 = vmatpush.msra.mxu0 %v1956
        %2045 = vmatpush.msra.mxu0 %v1955
        %2046 = vmatpush.msra.mxu0 %v1954
        %2047 = vmatpush.msra.mxu0 %v1953
        %2048 = vmatpush.msra.mxu0 %v1952
        %2049 = vmatpush.msra.mxu0 %v1951
        %2050 = vmatpush.msra.mxu0 %v1950
        %2051 = vmatpush.msra.mxu0 %v1949
        %2052 = vmatpush.msra.mxu0 %v1948
        %2053 = vmatpush.msra.mxu0 %v1947
        %2054 = vmatmul.f32.gmra.mxu0 %v2010
        %v2055 = vpop.f32.mrf.mxu0
        %v2056 = vadd.f32 %v2033, %v2055
        %2057 = vmatmul.f32.gmra.mxu0 %v2013
        %v2058 = vpop.f32.mrf.mxu0
        %v2059 = vadd.f32 %v2036, %v2058
        %2060 = vdwg.mxu0
        %2061 = vmatpush.msra.mxu0 %v1860
        %2062 = vmatpush.msra.mxu0 %v1859
        %2063 = vmatpush.msra.mxu0 %v1858
        %2064 = vmatpush.msra.mxu0 %v1857
        %2065 = vmatpush.msra.mxu0 %v1856
        %2066 = vmatpush.msra.mxu0 %v1855
        %2067 = vmatpush.msra.mxu0 %v1854
        %2068 = vmatpush.msra.mxu0 %v1853
        %2069 = vmatpush.msra.mxu0 %v1852
        %2070 = vmatpush.msra.mxu0 %v1851
        %2071 = vmatpush.msra.mxu0 %v1850
        %2072 = vmatpush.msra.mxu0 %v1849
        %2073 = vmatpush.msra.mxu0 %v1848
        %2074 = vmatpush.msra.mxu0 %v1847
        %2075 = vmatpush.msra.mxu0 %v1846
        %2076 = vmatpush.msra.mxu0 %v1845
        %2077 = vmatmul.f32.gmra.mxu0 %v1901
        %v2078 = vpop.f32.mrf.mxu0
        %v2079 = vadd.f32 %v2056, %v2078
        %2080 = vmatmul.f32.gmra.mxu0 %v1904
        %v2081 = vpop.f32.mrf.mxu0
        %v2082 = vadd.f32 %v2059, %v2081
        %2083 = vdwg.mxu0
        %2084 = vmatpush.msra.mxu0 %v1876
        %2085 = vmatpush.msra.mxu0 %v1875
        %2086 = vmatpush.msra.mxu0 %v1874
        %2087 = vmatpush.msra.mxu0 %v1873
        %2088 = vmatpush.msra.mxu0 %v1872
        %2089 = vmatpush.msra.mxu0 %v1871
        %2090 = vmatpush.msra.mxu0 %v1870
        %2091 = vmatpush.msra.mxu0 %v1869
        %2092 = vmatpush.msra.mxu0 %v1868
        %2093 = vmatpush.msra.mxu0 %v1867
        %2094 = vmatpush.msra.mxu0 %v1866
        %2095 = vmatpush.msra.mxu0 %v1865
        %2096 = vmatpush.msra.mxu0 %v1864
        %2097 = vmatpush.msra.mxu0 %v1863
        %2098 = vmatpush.msra.mxu0 %v1862
        %2099 = vmatpush.msra.mxu0 %v1861
        %2100 = vmatmul.f32.gmra.mxu0 %v1924
        %v2101 = vpop.f32.mrf.mxu0
        %v2102 = vadd.f32 %v2079, %v2101
        %2103 = vmatmul.f32.gmra.mxu0 %v1927
        %v2104 = vpop.f32.mrf.mxu0
        %v2105 = vadd.f32 %v2082, %v2104
        %2106 = vdwg.mxu0
        %v2107 = vld [vmem:[%s1 + $0xc0] sm:$0xff]
        %v2108 = vld [vmem:[%s1 + $0xc8] sm:$0xff]
        %v2109 = vld [vmem:[#allocation2 + $0x1300] sm:$0xff]
        %v2110 = vld [vmem:[#allocation2 + $0x1310] sm:$0xff]
        %v2111 = vld [vmem:[#allocation2 + $0x1320] sm:$0xff]
        %v2112 = vld [vmem:[#allocation2 + $0x1330] sm:$0xff]
        %v2113 = vld [vmem:[#allocation2 + $0x1340] sm:$0xff]
        %v2114 = vld [vmem:[#allocation2 + $0x1350] sm:$0xff]
        %v2115 = vld [vmem:[#allocation2 + $0x1360] sm:$0xff]
        %v2116 = vld [vmem:[#allocation2 + $0x1370] sm:$0xff]
        %v2117 = vld [vmem:[#allocation2 + $0x1380] sm:$0xff]
        %v2118 = vld [vmem:[#allocation2 + $0x1390] sm:$0xff]
        %v2119 = vld [vmem:[#allocation2 + $0x13a0] sm:$0xff]
        %v2120 = vld [vmem:[#allocation2 + $0x13b0] sm:$0xff]
        %v2121 = vld [vmem:[#allocation2 + $0x13c0] sm:$0xff]
        %v2122 = vld [vmem:[#allocation2 + $0x13d0] sm:$0xff]
        %v2123 = vld [vmem:[#allocation2 + $0x13e0] sm:$0xff]
        %v2124 = vld [vmem:[#allocation2 + $0x13f0] sm:$0xff]
        %v2125 = vld [vmem:[#allocation2 + $0x1400] sm:$0xff]
        %v2126 = vld [vmem:[#allocation2 + $0x1410] sm:$0xff]
        %v2127 = vld [vmem:[#allocation2 + $0x1420] sm:$0xff]
        %v2128 = vld [vmem:[#allocation2 + $0x1430] sm:$0xff]
        %v2129 = vld [vmem:[#allocation2 + $0x1440] sm:$0xff]
        %v2130 = vld [vmem:[#allocation2 + $0x1450] sm:$0xff]
        %v2131 = vld [vmem:[#allocation2 + $0x1460] sm:$0xff]
        %v2132 = vld [vmem:[#allocation2 + $0x1470] sm:$0xff]
        %v2133 = vld [vmem:[#allocation2 + $0x1480] sm:$0xff]
        %v2134 = vld [vmem:[#allocation2 + $0x1490] sm:$0xff]
        %v2135 = vld [vmem:[#allocation2 + $0x14a0] sm:$0xff]
        %v2136 = vld [vmem:[#allocation2 + $0x14b0] sm:$0xff]
        %v2137 = vld [vmem:[#allocation2 + $0x14c0] sm:$0xff]
        %v2138 = vld [vmem:[#allocation2 + $0x14d0] sm:$0xff]
        %v2139 = vld [vmem:[#allocation2 + $0x14e0] sm:$0xff]
        %v2140 = vld [vmem:[#allocation2 + $0x14f0] sm:$0xff]
        %v2142 = vsel %vm616, %v2107, 0
        %v2145 = vsel %vm616, %v2108, 0
        %2147 = vmatpush.msra.mxu0 0.0
        %2148 = vmatpush.msra.mxu0 0.0
        %2149 = vmatpush.msra.mxu0 0.0
        %2150 = vmatpush.msra.mxu0 0.0
        %2151 = vmatpush.msra.mxu0 0.0
        %2152 = vmatpush.msra.mxu0 0.0
        %2153 = vmatpush.msra.mxu0 0.0
        %2154 = vmatpush.msra.mxu0 0.0
        %2155 = vmatpush.msra.mxu0 0.0
        %2156 = vmatpush.msra.mxu0 0.0
        %2157 = vmatpush.msra.mxu0 0.0
        %2158 = vmatpush.msra.mxu0 0.0
        %2159 = vmatpush.msra.mxu0 0.0
        %2160 = vmatpush.msra.mxu0 0.0
        %2161 = vmatpush.msra.mxu0 0.0
        %2162 = vmatpush.msra.mxu0 %v1841
        %2163 = vmatmul.f32.gmra.mxu0 %v2142
        %v2164 = vpop.f32.mrf.mxu0
        %v2165 = vadd.f32 0.0, %v2164
        %2166 = vmatmul.f32.gmra.mxu0 %v2145
        %v2167 = vpop.f32.mrf.mxu0
        %v2168 = vadd.f32 0.0, %v2167
        %2169 = vdwg.mxu0
        %2170 = vmatpush.msra.mxu0 0.0
        %2171 = vmatpush.msra.mxu0 0.0
        %2172 = vmatpush.msra.mxu0 0.0
        %2173 = vmatpush.msra.mxu0 0.0
        %2174 = vmatpush.msra.mxu0 0.0
        %2175 = vmatpush.msra.mxu0 0.0
        %2176 = vmatpush.msra.mxu0 0.0
        %2177 = vmatpush.msra.mxu0 0.0
        %2178 = vmatpush.msra.mxu0 0.0
        %2179 = vmatpush.msra.mxu0 0.0
        %2180 = vmatpush.msra.mxu0 0.0
        %2181 = vmatpush.msra.mxu0 0.0
        %2182 = vmatpush.msra.mxu0 0.0
        %2183 = vmatpush.msra.mxu0 0.0
        %2184 = vmatpush.msra.mxu0 0.0
        %2185 = vmatpush.msra.mxu0 %v1842
        %2186 = vmatmul.f32.gmra.mxu0 %v2142
        %v2187 = vpop.f32.mrf.mxu0
        %v2188 = vadd.f32 0.0, %v2187
        %2189 = vmatmul.f32.gmra.mxu0 %v2145
        %v2190 = vpop.f32.mrf.mxu0
        %v2191 = vadd.f32 0.0, %v2190
        %2192 = vdwg.mxu0
        %2193 = vmatpush.msra.mxu0 %v2124
        %2194 = vmatpush.msra.mxu0 %v2123
        %2195 = vmatpush.msra.mxu0 %v2122
        %2196 = vmatpush.msra.mxu0 %v2121
        %2197 = vmatpush.msra.mxu0 %v2120
        %2198 = vmatpush.msra.mxu0 %v2119
        %2199 = vmatpush.msra.mxu0 %v2118
        %2200 = vmatpush.msra.mxu0 %v2117
        %2201 = vmatpush.msra.mxu0 %v2116
        %2202 = vmatpush.msra.mxu0 %v2115
        %2203 = vmatpush.msra.mxu0 %v2114
        %2204 = vmatpush.msra.mxu0 %v2113
        %2205 = vmatpush.msra.mxu0 %v2112
        %2206 = vmatpush.msra.mxu0 %v2111
        %2207 = vmatpush.msra.mxu0 %v2110
        %2208 = vmatpush.msra.mxu0 %v2109
        %2209 = vmatmul.f32.gmra.mxu0 %v2165
        %v2210 = vpop.f32.mrf.mxu0
        %v2211 = vadd.f32 0.0, %v2210
        %2212 = vmatmul.f32.gmra.mxu0 %v2168
        %v2213 = vpop.f32.mrf.mxu0
        %v2214 = vadd.f32 0.0, %v2213
        %2215 = vdwg.mxu0
        %2216 = vmatpush.msra.mxu0 %v2140
        %2217 = vmatpush.msra.mxu0 %v2139
        %2218 = vmatpush.msra.mxu0 %v2138
        %2219 = vmatpush.msra.mxu0 %v2137
        %2220 = vmatpush.msra.mxu0 %v2136
        %2221 = vmatpush.msra.mxu0 %v2135
        %2222 = vmatpush.msra.mxu0 %v2134
        %2223 = vmatpush.msra.mxu0 %v2133
        %2224 = vmatpush.msra.mxu0 %v2132
        %2225 = vmatpush.msra.mxu0 %v2131
        %2226 = vmatpush.msra.mxu0 %v2130
        %2227 = vmatpush.msra.mxu0 %v2129
        %2228 = vmatpush.msra.mxu0 %v2128
        %2229 = vmatpush.msra.mxu0 %v2127
        %2230 = vmatpush.msra.mxu0 %v2126
        %2231 = vmatpush.msra.mxu0 %v2125
        %2232 = vmatmul.f32.gmra.mxu0 %v2188
        %v2233 = vpop.f32.mrf.mxu0
        %v2234 = vadd.f32 %v2211, %v2233
        %2235 = vmatmul.f32.gmra.mxu0 %v2191
        %v2236 = vpop.f32.mrf.mxu0
        %v2237 = vadd.f32 %v2214, %v2236
        %2238 = vdwg.mxu0
        %v2239 = vadd.f32 %v2102, %v2234
        %v2240 = vadd.f32 %v2105, %v2237
        %v2241 = vld [vmem:[%s1 + $0xd0] sm:$0xff]
        %v2242 = vld [vmem:[%s1 + $0xd8] sm:$0xff]
        %v2243 = vld [vmem:[#allocation2 + $0x1500] sm:$0xff]
        %v2244 = vld [vmem:[#allocation2 + $0x1510] sm:$0xff]
        %v2245 = vld [vmem:[#allocation2 + $0x1520] sm:$0xff]
        %v2246 = vld [vmem:[#allocation2 + $0x1530] sm:$0xff]
        %v2247 = vld [vmem:[#allocation2 + $0x1540] sm:$0xff]
        %v2248 = vld [vmem:[#allocation2 + $0x1550] sm:$0xff]
        %v2249 = vld [vmem:[#allocation2 + $0x1560] sm:$0xff]
        %v2250 = vld [vmem:[#allocation2 + $0x1570] sm:$0xff]
        %v2251 = vld [vmem:[#allocation2 + $0x1580] sm:$0xff]
        %v2252 = vld [vmem:[#allocation2 + $0x1590] sm:$0xff]
        %v2253 = vld [vmem:[#allocation2 + $0x15a0] sm:$0xff]
        %v2254 = vld [vmem:[#allocation2 + $0x15b0] sm:$0xff]
        %v2255 = vld [vmem:[#allocation2 + $0x15c0] sm:$0xff]
        %v2256 = vld [vmem:[#allocation2 + $0x15d0] sm:$0xff]
        %v2257 = vld [vmem:[#allocation2 + $0x15e0] sm:$0xff]
        %v2258 = vld [vmem:[#allocation2 + $0x15f0] sm:$0xff]
        %v2259 = vld [vmem:[#allocation2 + $0x1600] sm:$0xff]
        %v2260 = vld [vmem:[#allocation2 + $0x1610] sm:$0xff]
        %v2261 = vld [vmem:[#allocation2 + $0x1620] sm:$0xff]
        %v2262 = vld [vmem:[#allocation2 + $0x1630] sm:$0xff]
        %v2263 = vld [vmem:[#allocation2 + $0x1640] sm:$0xff]
        %v2264 = vld [vmem:[#allocation2 + $0x1650] sm:$0xff]
        %v2265 = vld [vmem:[#allocation2 + $0x1660] sm:$0xff]
        %v2266 = vld [vmem:[#allocation2 + $0x1670] sm:$0xff]
        %v2267 = vld [vmem:[#allocation2 + $0x1680] sm:$0xff]
        %v2268 = vld [vmem:[#allocation2 + $0x1690] sm:$0xff]
        %v2269 = vld [vmem:[#allocation2 + $0x16a0] sm:$0xff]
        %v2270 = vld [vmem:[#allocation2 + $0x16b0] sm:$0xff]
        %v2271 = vld [vmem:[#allocation2 + $0x16c0] sm:$0xff]
        %v2272 = vld [vmem:[#allocation2 + $0x16d0] sm:$0xff]
        %v2273 = vld [vmem:[#allocation2 + $0x16e0] sm:$0xff]
        %v2274 = vld [vmem:[#allocation2 + $0x16f0] sm:$0xff]
        %v2276 = vsel %vm616, %v2241, 0
        %v2279 = vsel %vm616, %v2242, 0
        %2281 = vmatpush.msra.mxu0 0.0
        %2282 = vmatpush.msra.mxu0 0.0
        %2283 = vmatpush.msra.mxu0 0.0
        %2284 = vmatpush.msra.mxu0 0.0
        %2285 = vmatpush.msra.mxu0 0.0
        %2286 = vmatpush.msra.mxu0 0.0
        %2287 = vmatpush.msra.mxu0 0.0
        %2288 = vmatpush.msra.mxu0 0.0
        %2289 = vmatpush.msra.mxu0 0.0
        %2290 = vmatpush.msra.mxu0 0.0
        %2291 = vmatpush.msra.mxu0 0.0
        %2292 = vmatpush.msra.mxu0 0.0
        %2293 = vmatpush.msra.mxu0 0.0
        %2294 = vmatpush.msra.mxu0 0.0
        %2295 = vmatpush.msra.mxu0 0.0
        %2296 = vmatpush.msra.mxu0 %v1841
        %2297 = vmatmul.f32.gmra.mxu0 %v2276
        %v2298 = vpop.f32.mrf.mxu0
        %v2299 = vadd.f32 0.0, %v2298
        %2300 = vmatmul.f32.gmra.mxu0 %v2279
        %v2301 = vpop.f32.mrf.mxu0
        %v2302 = vadd.f32 0.0, %v2301
        %2303 = vdwg.mxu0
        %2304 = vmatpush.msra.mxu0 0.0
        %2305 = vmatpush.msra.mxu0 0.0
        %2306 = vmatpush.msra.mxu0 0.0
        %2307 = vmatpush.msra.mxu0 0.0
        %2308 = vmatpush.msra.mxu0 0.0
        %2309 = vmatpush.msra.mxu0 0.0
        %2310 = vmatpush.msra.mxu0 0.0
        %2311 = vmatpush.msra.mxu0 0.0
        %2312 = vmatpush.msra.mxu0 0.0
        %2313 = vmatpush.msra.mxu0 0.0
        %2314 = vmatpush.msra.mxu0 0.0
        %2315 = vmatpush.msra.mxu0 0.0
        %2316 = vmatpush.msra.mxu0 0.0
        %2317 = vmatpush.msra.mxu0 0.0
        %2318 = vmatpush.msra.mxu0 0.0
        %2319 = vmatpush.msra.mxu0 %v1842
        %2320 = vmatmul.f32.gmra.mxu0 %v2276
        %v2321 = vpop.f32.mrf.mxu0
        %v2322 = vadd.f32 0.0, %v2321
        %2323 = vmatmul.f32.gmra.mxu0 %v2279
        %v2324 = vpop.f32.mrf.mxu0
        %v2325 = vadd.f32 0.0, %v2324
        %2326 = vdwg.mxu0
        %2327 = vmatpush.msra.mxu0 %v2258
        %2328 = vmatpush.msra.mxu0 %v2257
        %2329 = vmatpush.msra.mxu0 %v2256
        %2330 = vmatpush.msra.mxu0 %v2255
        %2331 = vmatpush.msra.mxu0 %v2254
        %2332 = vmatpush.msra.mxu0 %v2253
        %2333 = vmatpush.msra.mxu0 %v2252
        %2334 = vmatpush.msra.mxu0 %v2251
        %2335 = vmatpush.msra.mxu0 %v2250
        %2336 = vmatpush.msra.mxu0 %v2249
        %2337 = vmatpush.msra.mxu0 %v2248
        %2338 = vmatpush.msra.mxu0 %v2247
        %2339 = vmatpush.msra.mxu0 %v2246
        %2340 = vmatpush.msra.mxu0 %v2245
        %2341 = vmatpush.msra.mxu0 %v2244
        %2342 = vmatpush.msra.mxu0 %v2243
        %2343 = vmatmul.f32.gmra.mxu0 %v2299
        %v2344 = vpop.f32.mrf.mxu0
        %v2345 = vadd.f32 0.0, %v2344
        %2346 = vmatmul.f32.gmra.mxu0 %v2302
        %v2347 = vpop.f32.mrf.mxu0
        %v2348 = vadd.f32 0.0, %v2347
        %2349 = vdwg.mxu0
        %2350 = vmatpush.msra.mxu0 %v2274
        %2351 = vmatpush.msra.mxu0 %v2273
        %2352 = vmatpush.msra.mxu0 %v2272
        %2353 = vmatpush.msra.mxu0 %v2271
        %2354 = vmatpush.msra.mxu0 %v2270
        %2355 = vmatpush.msra.mxu0 %v2269
        %2356 = vmatpush.msra.mxu0 %v2268
        %2357 = vmatpush.msra.mxu0 %v2267
        %2358 = vmatpush.msra.mxu0 %v2266
        %2359 = vmatpush.msra.mxu0 %v2265
        %2360 = vmatpush.msra.mxu0 %v2264
        %2361 = vmatpush.msra.mxu0 %v2263
        %2362 = vmatpush.msra.mxu0 %v2262
        %2363 = vmatpush.msra.mxu0 %v2261
        %2364 = vmatpush.msra.mxu0 %v2260
        %2365 = vmatpush.msra.mxu0 %v2259
        %2366 = vmatmul.f32.gmra.mxu0 %v2322
        %v2367 = vpop.f32.mrf.mxu0
        %v2368 = vadd.f32 %v2345, %v2367
        %2369 = vmatmul.f32.gmra.mxu0 %v2325
        %v2370 = vpop.f32.mrf.mxu0
        %v2371 = vadd.f32 %v2348, %v2370
        %2372 = vdwg.mxu0
        %v2373 = vadd.f32 %v2239, %v2368
        %v2374 = vadd.f32 %v2240, %v2371
        %v2375 = vld [vmem:[#allocation4 + $0x50] sm:$0xff]
        %v2376 = vld [vmem:[#allocation4 + $0x60] sm:$0xff]
        %v2377 = vadd.f32 %v2373, %v2375
        %v2378 = vadd.f32 %v2374, %v2376
        %v2379 = vmul.f32 %v2377, 0.01
        %v2380 = vmul.f32 %v2378, 0.01
        %v2381 = vmax.f32 %v2377, %v2379
        %v2382 = vmax.f32 %v2378, %v2380
        %2383 = vst.msk [vmem:[%s233] sm:$0xff] %vm318, %v2381
        %2384 = vst.msk [vmem:[%s233 + $0x8] sm:$0xff] %vm318, %v2382
        %s2385 = smul.u32 2, %s17
        %p2386 = scmp.lt.s32.totalorder %s2385, 3
        %s2387 = scalar_select %p2386, %s2385, 3
        %s2388 = smul.addr %s2387, 8
        %s2389 = scalar_lea.vmem %s4, %s2388
        // Predicated region
        $region45: #{_forward.1} parent=35 // pred_check
          %p2390 = pneg %p124
        $region46: #{_forward.1} parent=35 // pred_check_branch
          %2392 = sbr.rel (%p2390) target = $region48
        $region47: #{_forward.1} parent=35 // pred_region
          %s2393 = smul.u32 2, %s17
        $region48: #{_forward.1} parent=35 // pred_fallthru
          _
      $region36: #{_forward.1} parent=5 // pred_fallthru
        _
      %p2394 = scmp.le.s32.totalorder 2, %s12
      // Predicated region
      $region49: #{_forward.1} parent=5 // pred_check
        %p2395 = pneg %p2394
      $region50: #{_forward.1} parent=5 // pred_check_branch
        %2397 = sbr.rel (%p2395) target = $region52
      $region51: #{_forward.1} parent=5 // pred_region
        %s2398 = ssub.s32 %s12, 2
        // Predicated region
        $region53: #{_forward.1} parent=51 // pred_check
          %p2399 = pneg %p130
        $region54: #{_forward.1} parent=51 // pred_check_branch
          %2401 = sbr.rel (%p2399) target = $region56
        $region55: #{_forward.1} parent=51 // pred_region
          %s2402 = smul.u32 2, %s18
          %p2403 = scmp.lt.s32.totalorder %s2402, 3
          %s2404 = scalar_select %p2403, %s2402, 3
          %s2405 = smul.addr %s2404, 8
          %s2406 = scalar_lea.vmem %s4, %s2405
        $region56: #{_forward.1} parent=51 // pred_fallthru
          _
      $region52: #{_forward.1} parent=5 // pred_fallthru
        _
    $region6: #{_forward.1} parent=1 // loop_footer
      %s16 = sadd.s32 1, %s12
    $region7: #{_forward.1} parent=1 // loop_footer_branch
      %11 = sbr.rel target = $region3
    $region8: #{_forward.1} parent=1 // loop_exit
      _
    %2407 = vsyncpa [#allocation3], 1
    %s2408 = scalar_lea.sflag [#allocation3], 1
    %2409 = vsyncpa %s2408, 1
    %2410 = vsyncpa [#allocation5], 1

</llo_original>
